<compile_context>
chip_gen: v7x
topology: tpu7x:2x2x1
jax: 0.10.0
libtpu: 0.0.40
codegen_flags: <defaults>
</compile_context>

<pallas_src>
import functools

import jax
import jax.numpy as jnp
from jax import lax
from jax.experimental import pallas as pl
from jax.experimental.pallas import tpu as pltpu


def _round_up(x, m):
    return (x + m - 1) // m * m


def _lstm_chunk_kernel(t_valid, x_ref, w_hbm_ref, h_out_ref, c_out_ref,
                       w_scr, h_scr, c_scr):
    """One grid step == one (batch-tile, time-chunk); h/c carried in VMEM scratch."""
    ti = pl.program_id(1)
    t_chunk = x_ref.shape[0]
    h_pad = h_scr.shape[-1]

    @pl.when(ti == 0)
    def _():
        # Single-buffered resident recurrent weight: copied into VMEM once per
        # batch tile instead of being double-buffered by the BlockSpec pipeline.
        pltpu.sync_copy(w_hbm_ref, w_scr)
        h_scr[...] = jnp.zeros_like(h_scr)
        c_scr[...] = jnp.zeros_like(c_scr)

    w = w_scr[...]

    def step(t, carry):
        h, c = carry
        # gates = (embedding @ W_ih^T + b_ih + b_hh)[token]  +  h_prev @ W_hh^T
        gates = x_ref[t].astype(jnp.float32) + jnp.dot(
            h.astype(w.dtype), w, preferred_element_type=jnp.float32)
        # PyTorch LSTM gate order: input, forget, cell(g), output.
        # h_pad is a multiple of 128 => every gate slice is lane-tile aligned.
        i_g = jax.nn.sigmoid(gates[:, 0 * h_pad:1 * h_pad])
        f_g = jax.nn.sigmoid(gates[:, 1 * h_pad:2 * h_pad])
        g_g = jnp.tanh(gates[:, 2 * h_pad:3 * h_pad])
        o_g = jax.nn.sigmoid(gates[:, 3 * h_pad:4 * h_pad])
        c_new = f_g * c + i_g * g_g
        h_new = o_g * jnp.tanh(c_new)
        if t_valid % t_chunk != 0:
            # Time axis was padded up to a multiple of t_chunk; mask tail steps.
            ok = (ti * t_chunk + t) < t_valid
            h_new = jnp.where(ok, h_new, h)
            c_new = jnp.where(ok, c_new, c)
        return h_new, c_new

    h, c = lax.fori_loop(0, t_chunk, step, (h_scr[...], c_scr[...]), unroll=True)
    h_scr[...] = h
    c_scr[...] = c

    @pl.when(ti == pl.num_programs(1) - 1)
    def _():
        h_out_ref[0] = h.astype(h_out_ref.dtype)
        c_out_ref[0] = c.astype(c_out_ref.dtype)


def lstm_pallas(x_proj, w_hh_t, *, time_chunk=16, batch_block=256,
                vmem_limit_bytes=32 * 1024 * 1024):
    """x_proj: (T, B, 4*H_pad) fused input projection (bias folded in).
       w_hh_t: (H_pad, 4*H_pad) padded, gate-major transposed recurrent weight.
       Returns (h, c), each (1, B_pad, H_pad) float32."""
    t, b, g4 = x_proj.shape
    h_pad = w_hh_t.shape[0]
    assert g4 == 4 * h_pad and h_pad % 128 == 0
    assert t >= 1, "LSTM needs at least one timestep"

    t_chunk = min(time_chunk, t)
    t_pad = _round_up(t, t_chunk)
    bb = min(batch_block, _round_up(b, 8))        # batch tile (multiple of 8)
    b_pad = _round_up(b, bb)
    if (t_pad, b_pad) != (t, b):
        x_proj = jnp.pad(x_proj, ((0, t_pad - t), (0, b_pad - b), (0, 0)))

    grid = (b_pad // bb, t_pad // t_chunk)

    grid_spec = pltpu.PrefetchScalarGridSpec(
        num_scalar_prefetch=0,
        grid=grid,
        in_specs=[
            # (time-chunk, batch-tile, 4*H_pad) slab of the precomputed projection
            pl.BlockSpec((t_chunk, bb, 4 * h_pad), lambda bi, ti: (ti, bi, 0)),
            # W_hh^T stays in HBM; copied once per batch tile into VMEM scratch
            pl.BlockSpec(memory_space=pl.ANY),
        ],
        out_specs=[
            pl.BlockSpec((1, bb, h_pad), lambda bi, ti: (0, bi, 0)),  # hidden
            pl.BlockSpec((1, bb, h_pad), lambda bi, ti: (0, bi, 0)),  # cell
        ],
        scratch_shapes=[
            pltpu.VMEM((h_pad, 4 * h_pad), w_hh_t.dtype),   # resident W_hh^T
            pltpu.VMEM((bb, h_pad), jnp.float32),           # h carry (f32)
            pltpu.VMEM((bb, h_pad), jnp.float32),           # c carry (f32)
        ],
    )

    return pl.pallas_call(
        functools.partial(_lstm_chunk_kernel, t),
        out_shape=(
            jax.ShapeDtypeStruct((1, b_pad, h_pad), jnp.float32),
            jax.ShapeDtypeStruct((1, b_pad, h_pad), jnp.float32),
        ),
        grid_spec=grid_spec,
        compiler_params=pltpu.CompilerParams(
            # batch tiles are independent (megacore shard on v7x);
            # the time axis is a true recurrence.
            dimension_semantics=("parallel", "arbitrary"),
            vmem_limit_bytes=vmem_limit_bytes,
        ),
    )(x_proj, w_hh_t)


def encoder_forward(tokens, params, *, matmul_dtype=jnp.bfloat16,
                    time_chunk=16, batch_block=256):
    """tokens: (batch, seq) int32. Returns (hidden, cell), each (1, batch, hidden)."""
    b, _ = tokens.shape
    emb = params["embedding"]
    w_ih, w_hh = params["w_ih"], params["w_hh"]
    b_ih, b_hh = params["b_ih"], params["b_hh"]
    hidden = w_hh.shape[1]
    h_pad = _round_up(hidden, 128)

    # x.permute(1, 0): time-major token ids
    tok_t = tokens.transpose(1, 0)                                  # (T, B)

    # Fused input-projection table: embedding @ W_ih^T + (b_ih + b_hh),
    # laid out gate-major and zero-padded so each gate occupies a full,
    # 128-lane-aligned block of width h_pad.
    proj = (emb.astype(jnp.float32) @ w_ih.T.astype(jnp.float32)
            + (b_ih + b_hh)).reshape(-1, 4, hidden)                 # (vocab, 4, H)
    proj = jnp.pad(proj, ((0, 0), (0, 0), (0, h_pad - hidden)))
    proj = proj.reshape(-1, 4 * h_pad).astype(matmul_dtype)         # (vocab, 4*H_pad)

    # Dropout: identity in eval mode.
    # TODO(synk): train-mode dropout (p=0.3) on the embedding is not applied.
    x_proj = jnp.take(proj, tok_t, axis=0)                          # (T, B, 4*H_pad)

    # Recurrent weight: transpose + pad to (H_pad, 4*H_pad), gate-major columns.
    w_r = w_hh.reshape(4, hidden, hidden)                           # (gate, out, in)
    w_t = jnp.transpose(w_r, (2, 0, 1))                             # (in, gate, out)
    w_t = jnp.pad(w_t, ((0, h_pad - hidden), (0, 0), (0, h_pad - hidden)))
    w_hh_t = w_t.reshape(h_pad, 4 * h_pad).astype(matmul_dtype)

    h, c = lstm_pallas(x_proj, w_hh_t, time_chunk=time_chunk,
                       batch_block=batch_block)
    return h[:, :b, :hidden], c[:, :b, :hidden]


def lstm_reference(embedded, w_ih, w_hh, b_ih, b_hh):
    """Pure-JAX (f32) reference for correctness checking."""
    _, B, _ = embedded.shape
    H = w_hh.shape[1]

    def step(carry, x_t):
        h, c = carry
        gates = x_t @ w_ih.T + h @ w_hh.T + b_ih + b_hh
        i = jax.nn.sigmoid(gates[:, 0 * H:1 * H])
        f = jax.nn.sigmoid(gates[:, 1 * H:2 * H])
        g = jnp.tanh(gates[:, 2 * H:3 * H])
        o = jax.nn.sigmoid(gates[:, 3 * H:4 * H])
        c_new = f * c + i * g
        h_new = o * jnp.tanh(c_new)
        return (h_new, c_new), None

    init = (jnp.zeros((B, H), jnp.float32), jnp.zeros((B, H), jnp.float32))
    (h, c), _ = jax.lax.scan(step, init, embedded)
    return h[None], c[None]


if __name__ == "__main__":
    # Small shapes consistent with the module (embedding_size == input_size).
    vocab = 16            # input_size
    embed = 16            # embedding_size
    hidden = 32
    batch = 8
    seq = 8

    key = jax.random.PRNGKey(0)
    k_emb, k_wih, k_whh, k_bih, k_bhh, k_tok = jax.random.split(key, 6)

    bound = 1.0 / jnp.sqrt(hidden)
    params = {
        "embedding": jax.random.normal(k_emb, (vocab, embed), jnp.float32),
        "w_ih": jax.random.uniform(k_wih, (4 * hidden, embed), jnp.float32, -bound, bound),
        "w_hh": jax.random.uniform(k_whh, (4 * hidden, hidden), jnp.float32, -bound, bound),
        "b_ih": jax.random.uniform(k_bih, (4 * hidden,), jnp.float32, -bound, bound),
        "b_hh": jax.random.uniform(k_bhh, (4 * hidden,), jnp.float32, -bound, bound),
    }

    tokens = jax.random.randint(k_tok, (batch, seq), 0, vocab, dtype=jnp.int32)

    # Pure-JAX reference.
    emb_ref = jnp.take(params["embedding"], tokens.transpose(1, 0), axis=0)
    h_ref, c_ref = lstm_reference(emb_ref, params["w_ih"], params["w_hh"],
                                  params["b_ih"], params["b_hh"])

    # f32 matmul path: tight check.
    h32, c32 = jax.block_until_ready(
        encoder_forward(tokens, params, matmul_dtype=jnp.float32))
    assert h32.shape == (1, batch, hidden)
    assert c32.shape == (1, batch, hidden)
    assert jnp.allclose(h32, h_ref, atol=1e-4, rtol=1e-4)
    assert jnp.allclose(c32, c_ref, atol=1e-4, rtol=1e-4)

    # Default bf16 matmul path (MXU-native): loose check, f32 carries inside.
    hbf, cbf = jax.block_until_ready(encoder_forward(tokens, params))
    assert hbf.shape == (1, batch, hidden)
    assert cbf.shape == (1, batch, hidden)
    assert jnp.allclose(hbf, h_ref, atol=2e-2, rtol=2e-2)
    assert jnp.allclose(cbf, c_ref, atol=2e-2, rtol=2e-2)

    print("KERNEL_OK")
</pallas_src>

<mosaic_0001>
module attributes {stable_mosaic.version = 11 : i64} {
  func.func @_lstm_chunk_kernel(%arg0: i32, %arg1: i32, %arg2: memref<8x8x512xf32, #tpu.memory_space<vmem>>, %arg3: memref<128x512xf32, #tpu.memory_space<any>>, %arg4: memref<1x8x128xf32, #tpu.memory_space<vmem>>, %arg5: memref<1x8x128xf32, #tpu.memory_space<vmem>>, %arg6: memref<128x512xf32, #tpu.memory_space<vmem>>, %arg7: memref<8x128xf32, #tpu.memory_space<vmem>>, %arg8: memref<8x128xf32, #tpu.memory_space<vmem>>) attributes {dimension_semantics = [#tpu.dimension_semantics<parallel>, #tpu.dimension_semantics<arbitrary>], iteration_bounds = array<i64: 1, 1>, scalar_prefetch = 0 : i64, scratch_operands = 3 : i64, tpu.core_type = #tpu.core_type<tc>, window_params = [{transform_indices = @transform_0, window_bounds = array<i64: 8, 8, 512>}, {}, {transform_indices = @transform_2, window_bounds = array<i64: 1, 8, 128>}, {transform_indices = @transform_3, window_bounds = array<i64: 1, 8, 128>}]} {
    %c0_i32 = arith.constant 0 : i32
    %0 = arith.cmpi eq, %arg1, %c0_i32 : i32
    %1 = arith.extui %0 : i1 to i32
    %c0_i32_0 = arith.constant 0 : i32
    %2 = arith.cmpi ne, %1, %c0_i32_0 : i32
    scf.if %2 {
      "tpu.region"() ({
        %255 = tpu.sem_alloc : memref<!tpu.dma_semaphore, #tpu.memory_space<semaphore_mem>>
        tpu.enqueue_dma source(%arg3 : memref<128x512xf32, #tpu.memory_space<any>>) target(%arg6 : memref<128x512xf32, #tpu.memory_space<vmem>>) target_semaphore(%255 : memref<!tpu.dma_semaphore, #tpu.memory_space<semaphore_mem>>)
        tpu.wait_dma2 semaphore(%255 : memref<!tpu.dma_semaphore, #tpu.memory_space<semaphore_mem>>) src(%arg3 : memref<128x512xf32, #tpu.memory_space<any>>) dst(%arg6 : memref<128x512xf32, #tpu.memory_space<vmem>>)
        tpu.yield
      }) : () -> ()
      %cst_60 = arith.constant 0.000000e+00 : f32
      %251 = vector.broadcast %cst_60 : f32 to vector<8x128xf32>
      %c0_61 = arith.constant 0 : index
      %c0_62 = arith.constant 0 : index
      %252 = vector.load %arg7[%c0_61, %c0_62] : memref<8x128xf32, #tpu.memory_space<vmem>>, vector<8x128xf32>
      tpu.vector_store %arg7[%c0_61, %c0_62], %251 {strides = array<i32>} : memref<8x128xf32, #tpu.memory_space<vmem>>, vector<8x128xf32>,
      %cst_63 = arith.constant 0.000000e+00 : f32
      %253 = vector.broadcast %cst_63 : f32 to vector<8x128xf32>
      %c0_64 = arith.constant 0 : index
      %c0_65 = arith.constant 0 : index
      %254 = vector.load %arg8[%c0_64, %c0_65] : memref<8x128xf32, #tpu.memory_space<vmem>>, vector<8x128xf32>
      tpu.vector_store %arg8[%c0_64, %c0_65], %253 {strides = array<i32>} : memref<8x128xf32, #tpu.memory_space<vmem>>, vector<8x128xf32>,
    } else {
    }
    %c0 = arith.constant 0 : index
    %c0_1 = arith.constant 0 : index
    %3 = vector.load %arg6[%c0, %c0_1] : memref<128x512xf32, #tpu.memory_space<vmem>>, vector<128x512xf32>
    %c0_2 = arith.constant 0 : index
    %c0_3 = arith.constant 0 : index
    %4 = vector.load %arg7[%c0_2, %c0_3] : memref<8x128xf32, #tpu.memory_space<vmem>>, vector<8x128xf32>
    %c0_4 = arith.constant 0 : index
    %c0_5 = arith.constant 0 : index
    %5 = vector.load %arg8[%c0_4, %c0_5] : memref<8x128xf32, #tpu.memory_space<vmem>>, vector<8x128xf32>
    %c0_i32_6 = arith.constant 0 : i32
    %6 = arith.index_cast %c0_i32_6 : i32 to index
    %c0_7 = arith.constant 0 : index
    %c0_8 = arith.constant 0 : index
    %7 = vector.load %arg2[%6, %c0_7, %c0_8] : memref<8x8x512xf32, #tpu.memory_space<vmem>>, vector<1x8x512xf32>
    %8 = vector.shape_cast %7 : vector<1x8x512xf32> to vector<8x512xf32>
    %cst = arith.constant dense<0.000000e+00> : vector<8x512xf32>
    %9 = tpu.matmul %4, %3, %cst {dimension_numbers = #tpu.dot_dimension_numbers<[1], [0], [0], [1], [0, 0, 1, 1], [], []>} : vector<8x128xf32>, vector<128x512xf32>, vector<8x512xf32> -> vector<8x512xf32>
    %10 = arith.addf %8, %9 : vector<8x512xf32>
    %11 = vector.extract_strided_slice %10 {offsets = [0, 0], sizes = [8, 128], strides = [1, 1]} : vector<8x512xf32> to vector<8x128xf32>
    %12 = arith.negf %11 : vector<8x128xf32>
    %13 = math.exp %12 : vector<8x128xf32>
    %cst_9 = arith.constant 1.000000e+00 : f32
    %14 = vector.broadcast %cst_9 : f32 to vector<8x128xf32>
    %15 = arith.addf %14, %13 : vector<8x128xf32>
    %16 = arith.divf %14, %15 : vector<8x128xf32>
    %17 = vector.extract_strided_slice %10 {offsets = [0, 128], sizes = [8, 128], strides = [1, 1]} : vector<8x512xf32> to vector<8x128xf32>
    %18 = arith.negf %17 : vector<8x128xf32>
    %19 = math.exp %18 : vector<8x128xf32>
    %cst_10 = arith.constant 1.000000e+00 : f32
    %20 = vector.broadcast %cst_10 : f32 to vector<8x128xf32>
    %21 = arith.addf %20, %19 : vector<8x128xf32>
    %22 = arith.divf %20, %21 : vector<8x128xf32>
    %23 = vector.extract_strided_slice %10 {offsets = [0, 256], sizes = [8, 128], strides = [1, 1]} : vector<8x512xf32> to vector<8x128xf32>
    %24 = math.tanh %23 : vector<8x128xf32>
    %25 = vector.extract_strided_slice %10 {offsets = [0, 384], sizes = [8, 128], strides = [1, 1]} : vector<8x512xf32> to vector<8x128xf32>
    %26 = arith.negf %25 : vector<8x128xf32>
    %27 = math.exp %26 : vector<8x128xf32>
    %cst_11 = arith.constant 1.000000e+00 : f32
    %28 = vector.broadcast %cst_11 : f32 to vector<8x128xf32>
    %29 = arith.addf %28, %27 : vector<8x128xf32>
    %30 = arith.divf %28, %29 : vector<8x128xf32>
    %31 = arith.mulf %22, %5 : vector<8x128xf32>
    %32 = arith.mulf %16, %24 : vector<8x128xf32>
    %33 = arith.addf %31, %32 : vector<8x128xf32>
    %34 = math.tanh %33 : vector<8x128xf32>
    %35 = arith.mulf %30, %34 : vector<8x128xf32>
    %c1_i32 = arith.constant 1 : i32
    %36 = arith.index_cast %c1_i32 : i32 to index
    %c0_12 = arith.constant 0 : index
    %c0_13 = arith.constant 0 : index
    %37 = vector.load %arg2[%36, %c0_12, %c0_13] : memref<8x8x512xf32, #tpu.memory_space<vmem>>, vector<1x8x512xf32>
    %38 = vector.shape_cast %37 : vector<1x8x512xf32> to vector<8x512xf32>
    %cst_14 = arith.constant dense<0.000000e+00> : vector<8x512xf32>
    %39 = tpu.matmul %35, %3, %cst_14 {dimension_numbers = #tpu.dot_dimension_numbers<[1], [0], [0], [1], [0, 0, 1, 1], [], []>} : vector<8x128xf32>, vector<128x512xf32>, vector<8x512xf32> -> vector<8x512xf32>
    %40 = arith.addf %38, %39 : vector<8x512xf32>
    %41 = vector.extract_strided_slice %40 {offsets = [0, 0], sizes = [8, 128], strides = [1, 1]} : vector<8x512xf32> to vector<8x128xf32>
    %42 = arith.negf %41 : vector<8x128xf32>
    %43 = math.exp %42 : vector<8x128xf32>
    %cst_15 = arith.constant 1.000000e+00 : f32
    %44 = vector.broadcast %cst_15 : f32 to vector<8x128xf32>
    %45 = arith.addf %44, %43 : vector<8x128xf32>
    %46 = arith.divf %44, %45 : vector<8x128xf32>
    %47 = vector.extract_strided_slice %40 {offsets = [0, 128], sizes = [8, 128], strides = [1, 1]} : vector<8x512xf32> to vector<8x128xf32>
    %48 = arith.negf %47 : vector<8x128xf32>
    %49 = math.exp %48 : vector<8x128xf32>
    %cst_16 = arith.constant 1.000000e+00 : f32
    %50 = vector.broadcast %cst_16 : f32 to vector<8x128xf32>
    %51 = arith.addf %50, %49 : vector<8x128xf32>
    %52 = arith.divf %50, %51 : vector<8x128xf32>
    %53 = vector.extract_strided_slice %40 {offsets = [0, 256], sizes = [8, 128], strides = [1, 1]} : vector<8x512xf32> to vector<8x128xf32>
    %54 = math.tanh %53 : vector<8x128xf32>
    %55 = vector.extract_strided_slice %40 {offsets = [0, 384], sizes = [8, 128], strides = [1, 1]} : vector<8x512xf32> to vector<8x128xf32>
    %56 = arith.negf %55 : vector<8x128xf32>
    %57 = math.exp %56 : vector<8x128xf32>
    %cst_17 = arith.constant 1.000000e+00 : f32
    %58 = vector.broadcast %cst_17 : f32 to vector<8x128xf32>
    %59 = arith.addf %58, %57 : vector<8x128xf32>
    %60 = arith.divf %58, %59 : vector<8x128xf32>
    %61 = arith.mulf %52, %33 : vector<8x128xf32>
    %62 = arith.mulf %46, %54 : vector<8x128xf32>
    %63 = arith.addf %61, %62 : vector<8x128xf32>
    %64 = math.tanh %63 : vector<8x128xf32>
    %65 = arith.mulf %60, %64 : vector<8x128xf32>
    %c2_i32 = arith.constant 2 : i32
    %66 = arith.index_cast %c2_i32 : i32 to index
    %c0_18 = arith.constant 0 : index
    %c0_19 = arith.constant 0 : index
    %67 = vector.load %arg2[%66, %c0_18, %c0_19] : memref<8x8x512xf32, #tpu.memory_space<vmem>>, vector<1x8x512xf32>
    %68 = vector.shape_cast %67 : vector<1x8x512xf32> to vector<8x512xf32>
    %cst_20 = arith.constant dense<0.000000e+00> : vector<8x512xf32>
    %69 = tpu.matmul %65, %3, %cst_20 {dimension_numbers = #tpu.dot_dimension_numbers<[1], [0], [0], [1], [0, 0, 1, 1], [], []>} : vector<8x128xf32>, vector<128x512xf32>, vector<8x512xf32> -> vector<8x512xf32>
    %70 = arith.addf %68, %69 : vector<8x512xf32>
    %71 = vector.extract_strided_slice %70 {offsets = [0, 0], sizes = [8, 128], strides = [1, 1]} : vector<8x512xf32> to vector<8x128xf32>
    %72 = arith.negf %71 : vector<8x128xf32>
    %73 = math.exp %72 : vector<8x128xf32>
    %cst_21 = arith.constant 1.000000e+00 : f32
    %74 = vector.broadcast %cst_21 : f32 to vector<8x128xf32>
    %75 = arith.addf %74, %73 : vector<8x128xf32>
    %76 = arith.divf %74, %75 : vector<8x128xf32>
    %77 = vector.extract_strided_slice %70 {offsets = [0, 128], sizes = [8, 128], strides = [1, 1]} : vector<8x512xf32> to vector<8x128xf32>
    %78 = arith.negf %77 : vector<8x128xf32>
    %79 = math.exp %78 : vector<8x128xf32>
    %cst_22 = arith.constant 1.000000e+00 : f32
    %80 = vector.broadcast %cst_22 : f32 to vector<8x128xf32>
    %81 = arith.addf %80, %79 : vector<8x128xf32>
    %82 = arith.divf %80, %81 : vector<8x128xf32>
    %83 = vector.extract_strided_slice %70 {offsets = [0, 256], sizes = [8, 128], strides = [1, 1]} : vector<8x512xf32> to vector<8x128xf32>
    %84 = math.tanh %83 : vector<8x128xf32>
    %85 = vector.extract_strided_slice %70 {offsets = [0, 384], sizes = [8, 128], strides = [1, 1]} : vector<8x512xf32> to vector<8x128xf32>
    %86 = arith.negf %85 : vector<8x128xf32>
    %87 = math.exp %86 : vector<8x128xf32>
    %cst_23 = arith.constant 1.000000e+00 : f32
    %88 = vector.broadcast %cst_23 : f32 to vector<8x128xf32>
    %89 = arith.addf %88, %87 : vector<8x128xf32>
    %90 = arith.divf %88, %89 : vector<8x128xf32>
    %91 = arith.mulf %82, %63 : vector<8x128xf32>
    %92 = arith.mulf %76, %84 : vector<8x128xf32>
    %93 = arith.addf %91, %92 : vector<8x128xf32>
    %94 = math.tanh %93 : vector<8x128xf32>
    %95 = arith.mulf %90, %94 : vector<8x128xf32>
    %c3_i32 = arith.constant 3 : i32
    %96 = arith.index_cast %c3_i32 : i32 to index
    %c0_24 = arith.constant 0 : index
    %c0_25 = arith.constant 0 : index
    %97 = vector.load %arg2[%96, %c0_24, %c0_25] : memref<8x8x512xf32, #tpu.memory_space<vmem>>, vector<1x8x512xf32>
    %98 = vector.shape_cast %97 : vector<1x8x512xf32> to vector<8x512xf32>
    %cst_26 = arith.constant dense<0.000000e+00> : vector<8x512xf32>
    %99 = tpu.matmul %95, %3, %cst_26 {dimension_numbers = #tpu.dot_dimension_numbers<[1], [0], [0], [1], [0, 0, 1, 1], [], []>} : vector<8x128xf32>, vector<128x512xf32>, vector<8x512xf32> -> vector<8x512xf32>
    %100 = arith.addf %98, %99 : vector<8x512xf32>
    %101 = vector.extract_strided_slice %100 {offsets = [0, 0], sizes = [8, 128], strides = [1, 1]} : vector<8x512xf32> to vector<8x128xf32>
    %102 = arith.negf %101 : vector<8x128xf32>
    %103 = math.exp %102 : vector<8x128xf32>
    %cst_27 = arith.constant 1.000000e+00 : f32
    %104 = vector.broadcast %cst_27 : f32 to vector<8x128xf32>
    %105 = arith.addf %104, %103 : vector<8x128xf32>
    %106 = arith.divf %104, %105 : vector<8x128xf32>
    %107 = vector.extract_strided_slice %100 {offsets = [0, 128], sizes = [8, 128], strides = [1, 1]} : vector<8x512xf32> to vector<8x128xf32>
    %108 = arith.negf %107 : vector<8x128xf32>
    %109 = math.exp %108 : vector<8x128xf32>
    %cst_28 = arith.constant 1.000000e+00 : f32
    %110 = vector.broadcast %cst_28 : f32 to vector<8x128xf32>
    %111 = arith.addf %110, %109 : vector<8x128xf32>
    %112 = arith.divf %110, %111 : vector<8x128xf32>
    %113 = vector.extract_strided_slice %100 {offsets = [0, 256], sizes = [8, 128], strides = [1, 1]} : vector<8x512xf32> to vector<8x128xf32>
    %114 = math.tanh %113 : vector<8x128xf32>
    %115 = vector.extract_strided_slice %100 {offsets = [0, 384], sizes = [8, 128], strides = [1, 1]} : vector<8x512xf32> to vector<8x128xf32>
    %116 = arith.negf %115 : vector<8x128xf32>
    %117 = math.exp %116 : vector<8x128xf32>
    %cst_29 = arith.constant 1.000000e+00 : f32
    %118 = vector.broadcast %cst_29 : f32 to vector<8x128xf32>
    %119 = arith.addf %118, %117 : vector<8x128xf32>
    %120 = arith.divf %118, %119 : vector<8x128xf32>
    %121 = arith.mulf %112, %93 : vector<8x128xf32>
    %122 = arith.mulf %106, %114 : vector<8x128xf32>
    %123 = arith.addf %121, %122 : vector<8x128xf32>
    %124 = math.tanh %123 : vector<8x128xf32>
    %125 = arith.mulf %120, %124 : vector<8x128xf32>
    %c4_i32 = arith.constant 4 : i32
    %126 = arith.index_cast %c4_i32 : i32 to index
    %c0_30 = arith.constant 0 : index
    %c0_31 = arith.constant 0 : index
    %127 = vector.load %arg2[%126, %c0_30, %c0_31] : memref<8x8x512xf32, #tpu.memory_space<vmem>>, vector<1x8x512xf32>
    %128 = vector.shape_cast %127 : vector<1x8x512xf32> to vector<8x512xf32>
    %cst_32 = arith.constant dense<0.000000e+00> : vector<8x512xf32>
    %129 = tpu.matmul %125, %3, %cst_32 {dimension_numbers = #tpu.dot_dimension_numbers<[1], [0], [0], [1], [0, 0, 1, 1], [], []>} : vector<8x128xf32>, vector<128x512xf32>, vector<8x512xf32> -> vector<8x512xf32>
    %130 = arith.addf %128, %129 : vector<8x512xf32>
    %131 = vector.extract_strided_slice %130 {offsets = [0, 0], sizes = [8, 128], strides = [1, 1]} : vector<8x512xf32> to vector<8x128xf32>
    %132 = arith.negf %131 : vector<8x128xf32>
    %133 = math.exp %132 : vector<8x128xf32>
    %cst_33 = arith.constant 1.000000e+00 : f32
    %134 = vector.broadcast %cst_33 : f32 to vector<8x128xf32>
    %135 = arith.addf %134, %133 : vector<8x128xf32>
    %136 = arith.divf %134, %135 : vector<8x128xf32>
    %137 = vector.extract_strided_slice %130 {offsets = [0, 128], sizes = [8, 128], strides = [1, 1]} : vector<8x512xf32> to vector<8x128xf32>
    %138 = arith.negf %137 : vector<8x128xf32>
    %139 = math.exp %138 : vector<8x128xf32>
    %cst_34 = arith.constant 1.000000e+00 : f32
    %140 = vector.broadcast %cst_34 : f32 to vector<8x128xf32>
    %141 = arith.addf %140, %139 : vector<8x128xf32>
    %142 = arith.divf %140, %141 : vector<8x128xf32>
    %143 = vector.extract_strided_slice %130 {offsets = [0, 256], sizes = [8, 128], strides = [1, 1]} : vector<8x512xf32> to vector<8x128xf32>
    %144 = math.tanh %143 : vector<8x128xf32>
    %145 = vector.extract_strided_slice %130 {offsets = [0, 384], sizes = [8, 128], strides = [1, 1]} : vector<8x512xf32> to vector<8x128xf32>
    %146 = arith.negf %145 : vector<8x128xf32>
    %147 = math.exp %146 : vector<8x128xf32>
    %cst_35 = arith.constant 1.000000e+00 : f32
    %148 = vector.broadcast %cst_35 : f32 to vector<8x128xf32>
    %149 = arith.addf %148, %147 : vector<8x128xf32>
    %150 = arith.divf %148, %149 : vector<8x128xf32>
    %151 = arith.mulf %142, %123 : vector<8x128xf32>
    %152 = arith.mulf %136, %144 : vector<8x128xf32>
    %153 = arith.addf %151, %152 : vector<8x128xf32>
    %154 = math.tanh %153 : vector<8x128xf32>
    %155 = arith.mulf %150, %154 : vector<8x128xf32>
    %c5_i32 = arith.constant 5 : i32
    %156 = arith.index_cast %c5_i32 : i32 to index
    %c0_36 = arith.constant 0 : index
    %c0_37 = arith.constant 0 : index
    %157 = vector.load %arg2[%156, %c0_36, %c0_37] : memref<8x8x512xf32, #tpu.memory_space<vmem>>, vector<1x8x512xf32>
    %158 = vector.shape_cast %157 : vector<1x8x512xf32> to vector<8x512xf32>
    %cst_38 = arith.constant dense<0.000000e+00> : vector<8x512xf32>
    %159 = tpu.matmul %155, %3, %cst_38 {dimension_numbers = #tpu.dot_dimension_numbers<[1], [0], [0], [1], [0, 0, 1, 1], [], []>} : vector<8x128xf32>, vector<128x512xf32>, vector<8x512xf32> -> vector<8x512xf32>
    %160 = arith.addf %158, %159 : vector<8x512xf32>
    %161 = vector.extract_strided_slice %160 {offsets = [0, 0], sizes = [8, 128], strides = [1, 1]} : vector<8x512xf32> to vector<8x128xf32>
    %162 = arith.negf %161 : vector<8x128xf32>
    %163 = math.exp %162 : vector<8x128xf32>
    %cst_39 = arith.constant 1.000000e+00 : f32
    %164 = vector.broadcast %cst_39 : f32 to vector<8x128xf32>
    %165 = arith.addf %164, %163 : vector<8x128xf32>
    %166 = arith.divf %164, %165 : vector<8x128xf32>
    %167 = vector.extract_strided_slice %160 {offsets = [0, 128], sizes = [8, 128], strides = [1, 1]} : vector<8x512xf32> to vector<8x128xf32>
    %168 = arith.negf %167 : vector<8x128xf32>
    %169 = math.exp %168 : vector<8x128xf32>
    %cst_40 = arith.constant 1.000000e+00 : f32
    %170 = vector.broadcast %cst_40 : f32 to vector<8x128xf32>
    %171 = arith.addf %170, %169 : vector<8x128xf32>
    %172 = arith.divf %170, %171 : vector<8x128xf32>
    %173 = vector.extract_strided_slice %160 {offsets = [0, 256], sizes = [8, 128], strides = [1, 1]} : vector<8x512xf32> to vector<8x128xf32>
    %174 = math.tanh %173 : vector<8x128xf32>
    %175 = vector.extract_strided_slice %160 {offsets = [0, 384], sizes = [8, 128], strides = [1, 1]} : vector<8x512xf32> to vector<8x128xf32>
    %176 = arith.negf %175 : vector<8x128xf32>
    %177 = math.exp %176 : vector<8x128xf32>
    %cst_41 = arith.constant 1.000000e+00 : f32
    %178 = vector.broadcast %cst_41 : f32 to vector<8x128xf32>
    %179 = arith.addf %178, %177 : vector<8x128xf32>
    %180 = arith.divf %178, %179 : vector<8x128xf32>
    %181 = arith.mulf %172, %153 : vector<8x128xf32>
    %182 = arith.mulf %166, %174 : vector<8x128xf32>
    %183 = arith.addf %181, %182 : vector<8x128xf32>
    %184 = math.tanh %183 : vector<8x128xf32>
    %185 = arith.mulf %180, %184 : vector<8x128xf32>
    %c6_i32 = arith.constant 6 : i32
    %186 = arith.index_cast %c6_i32 : i32 to index
    %c0_42 = arith.constant 0 : index
    %c0_43 = arith.constant 0 : index
    %187 = vector.load %arg2[%186, %c0_42, %c0_43] : memref<8x8x512xf32, #tpu.memory_space<vmem>>, vector<1x8x512xf32>
    %188 = vector.shape_cast %187 : vector<1x8x512xf32> to vector<8x512xf32>
    %cst_44 = arith.constant dense<0.000000e+00> : vector<8x512xf32>
    %189 = tpu.matmul %185, %3, %cst_44 {dimension_numbers = #tpu.dot_dimension_numbers<[1], [0], [0], [1], [0, 0, 1, 1], [], []>} : vector<8x128xf32>, vector<128x512xf32>, vector<8x512xf32> -> vector<8x512xf32>
    %190 = arith.addf %188, %189 : vector<8x512xf32>
    %191 = vector.extract_strided_slice %190 {offsets = [0, 0], sizes = [8, 128], strides = [1, 1]} : vector<8x512xf32> to vector<8x128xf32>
    %192 = arith.negf %191 : vector<8x128xf32>
    %193 = math.exp %192 : vector<8x128xf32>
    %cst_45 = arith.constant 1.000000e+00 : f32
    %194 = vector.broadcast %cst_45 : f32 to vector<8x128xf32>
    %195 = arith.addf %194, %193 : vector<8x128xf32>
    %196 = arith.divf %194, %195 : vector<8x128xf32>
    %197 = vector.extract_strided_slice %190 {offsets = [0, 128], sizes = [8, 128], strides = [1, 1]} : vector<8x512xf32> to vector<8x128xf32>
    %198 = arith.negf %197 : vector<8x128xf32>
    %199 = math.exp %198 : vector<8x128xf32>
    %cst_46 = arith.constant 1.000000e+00 : f32
    %200 = vector.broadcast %cst_46 : f32 to vector<8x128xf32>
    %201 = arith.addf %200, %199 : vector<8x128xf32>
    %202 = arith.divf %200, %201 : vector<8x128xf32>
    %203 = vector.extract_strided_slice %190 {offsets = [0, 256], sizes = [8, 128], strides = [1, 1]} : vector<8x512xf32> to vector<8x128xf32>
    %204 = math.tanh %203 : vector<8x128xf32>
    %205 = vector.extract_strided_slice %190 {offsets = [0, 384], sizes = [8, 128], strides = [1, 1]} : vector<8x512xf32> to vector<8x128xf32>
    %206 = arith.negf %205 : vector<8x128xf32>
    %207 = math.exp %206 : vector<8x128xf32>
    %cst_47 = arith.constant 1.000000e+00 : f32
    %208 = vector.broadcast %cst_47 : f32 to vector<8x128xf32>
    %209 = arith.addf %208, %207 : vector<8x128xf32>
    %210 = arith.divf %208, %209 : vector<8x128xf32>
    %211 = arith.mulf %202, %183 : vector<8x128xf32>
    %212 = arith.mulf %196, %204 : vector<8x128xf32>
    %213 = arith.addf %211, %212 : vector<8x128xf32>
    %214 = math.tanh %213 : vector<8x128xf32>
    %215 = arith.mulf %210, %214 : vector<8x128xf32>
    %c7_i32 = arith.constant 7 : i32
    %216 = arith.index_cast %c7_i32 : i32 to index
    %c0_48 = arith.constant 0 : index
    %c0_49 = arith.constant 0 : index
    %217 = vector.load %arg2[%216, %c0_48, %c0_49] : memref<8x8x512xf32, #tpu.memory_space<vmem>>, vector<1x8x512xf32>
    %218 = vector.shape_cast %217 : vector<1x8x512xf32> to vector<8x512xf32>
    %cst_50 = arith.constant dense<0.000000e+00> : vector<8x512xf32>
    %219 = tpu.matmul %215, %3, %cst_50 {dimension_numbers = #tpu.dot_dimension_numbers<[1], [0], [0], [1], [0, 0, 1, 1], [], []>} : vector<8x128xf32>, vector<128x512xf32>, vector<8x512xf32> -> vector<8x512xf32>
    %220 = arith.addf %218, %219 : vector<8x512xf32>
    %221 = vector.extract_strided_slice %220 {offsets = [0, 0], sizes = [8, 128], strides = [1, 1]} : vector<8x512xf32> to vector<8x128xf32>
    %222 = arith.negf %221 : vector<8x128xf32>
    %223 = math.exp %222 : vector<8x128xf32>
    %cst_51 = arith.constant 1.000000e+00 : f32
    %224 = vector.broadcast %cst_51 : f32 to vector<8x128xf32>
    %225 = arith.addf %224, %223 : vector<8x128xf32>
    %226 = arith.divf %224, %225 : vector<8x128xf32>
    %227 = vector.extract_strided_slice %220 {offsets = [0, 128], sizes = [8, 128], strides = [1, 1]} : vector<8x512xf32> to vector<8x128xf32>
    %228 = arith.negf %227 : vector<8x128xf32>
    %229 = math.exp %228 : vector<8x128xf32>
    %cst_52 = arith.constant 1.000000e+00 : f32
    %230 = vector.broadcast %cst_52 : f32 to vector<8x128xf32>
    %231 = arith.addf %230, %229 : vector<8x128xf32>
    %232 = arith.divf %230, %231 : vector<8x128xf32>
    %233 = vector.extract_strided_slice %220 {offsets = [0, 256], sizes = [8, 128], strides = [1, 1]} : vector<8x512xf32> to vector<8x128xf32>
    %234 = math.tanh %233 : vector<8x128xf32>
    %235 = vector.extract_strided_slice %220 {offsets = [0, 384], sizes = [8, 128], strides = [1, 1]} : vector<8x512xf32> to vector<8x128xf32>
    %236 = arith.negf %235 : vector<8x128xf32>
    %237 = math.exp %236 : vector<8x128xf32>
    %cst_53 = arith.constant 1.000000e+00 : f32
    %238 = vector.broadcast %cst_53 : f32 to vector<8x128xf32>
    %239 = arith.addf %238, %237 : vector<8x128xf32>
    %240 = arith.divf %238, %239 : vector<8x128xf32>
    %241 = arith.mulf %232, %213 : vector<8x128xf32>
    %242 = arith.mulf %226, %234 : vector<8x128xf32>
    %243 = arith.addf %241, %242 : vector<8x128xf32>
    %244 = math.tanh %243 : vector<8x128xf32>
    %245 = arith.mulf %240, %244 : vector<8x128xf32>
    %c8_i32 = arith.constant 8 : i32
    %c0_54 = arith.constant 0 : index
    %c0_55 = arith.constant 0 : index
    %246 = vector.load %arg7[%c0_54, %c0_55] : memref<8x128xf32, #tpu.memory_space<vmem>>, vector<8x128xf32>
    tpu.vector_store %arg7[%c0_54, %c0_55], %245 {strides = array<i32>} : memref<8x128xf32, #tpu.memory_space<vmem>>, vector<8x128xf32>,
    %c0_56 = arith.constant 0 : index
    %c0_57 = arith.constant 0 : index
    %247 = vector.load %arg8[%c0_56, %c0_57] : memref<8x128xf32, #tpu.memory_space<vmem>>, vector<8x128xf32>
    tpu.vector_store %arg8[%c0_56, %c0_57], %243 {strides = array<i32>} : memref<8x128xf32, #tpu.memory_space<vmem>>, vector<8x128xf32>,
    %c0_i32_58 = arith.constant 0 : i32
    %248 = arith.cmpi eq, %arg1, %c0_i32_58 : i32
    %249 = arith.extui %248 : i1 to i32
    %c0_i32_59 = arith.constant 0 : i32
    %250 = arith.cmpi ne, %249, %c0_i32_59 : i32
    scf.if %250 {
      %c0_60 = arith.constant 0 : index
      %c0_61 = arith.constant 0 : index
      %c0_62 = arith.constant 0 : index
      %251 = vector.load %arg4[%c0_60, %c0_61, %c0_62] : memref<1x8x128xf32, #tpu.memory_space<vmem>>, vector<1x8x128xf32>
      %252 = vector.shape_cast %251 : vector<1x8x128xf32> to vector<8x128xf32>
      %253 = vector.shape_cast %245 : vector<8x128xf32> to vector<1x8x128xf32>
      tpu.vector_store %arg4[%c0_60, %c0_61, %c0_62], %253 {strides = array<i32>} : memref<1x8x128xf32, #tpu.memory_space<vmem>>, vector<1x8x128xf32>,
      %c0_63 = arith.constant 0 : index
      %c0_64 = arith.constant 0 : index
      %c0_65 = arith.constant 0 : index
      %254 = vector.load %arg5[%c0_63, %c0_64, %c0_65] : memref<1x8x128xf32, #tpu.memory_space<vmem>>, vector<1x8x128xf32>
      %255 = vector.shape_cast %254 : vector<1x8x128xf32> to vector<8x128xf32>
      %256 = vector.shape_cast %243 : vector<8x128xf32> to vector<1x8x128xf32>
      tpu.vector_store %arg5[%c0_63, %c0_64, %c0_65], %256 {strides = array<i32>} : memref<1x8x128xf32, #tpu.memory_space<vmem>>, vector<1x8x128xf32>,
    } else {
    }
    return
  }
  func.func @transform_0(%arg0: i32, %arg1: i32) -> (i32, i32, i32) {
    %c0_i32 = arith.constant 0 : i32
    %c0_i32_0 = arith.constant 0 : i32
    return %arg1, %arg0, %c0_i32 : i32, i32, i32
  }
  func.func @transform_2(%arg0: i32, %arg1: i32) -> (i32, i32, i32) {
    %c0_i32 = arith.constant 0 : i32
    %c0_i32_0 = arith.constant 0 : i32
    %c0_i32_1 = arith.constant 0 : i32
    return %c0_i32, %arg0, %c0_i32_0 : i32, i32, i32
  }
  func.func @transform_3(%arg0: i32, %arg1: i32) -> (i32, i32, i32) {
    %c0_i32 = arith.constant 0 : i32
    %c0_i32_0 = arith.constant 0 : i32
    %c0_i32_1 = arith.constant 0 : i32
    return %c0_i32, %arg0, %c0_i32_0 : i32, i32, i32
  }
}

</mosaic_0001>

<llo_original>
// kernel: tpu_custom_call.1
$region0: #{tpu_custom_call.1}
  #allocation0 [shape = 'u32[]', space=smem, size = 0x4, offset = 0x4, fixed_abs, tag = 'smem constant byte address 0x4 - core index']
  #allocation1 [shape = 'u32[144,128]{1,0:T(1,128)}', space=vmem, size = 0x12000, scoped, tag = 'internal scratch']
  #allocation2 [shape = 'f32[128,512]{1,0:T(8,128)}', space=vmem, size = 0x40000, scoped, tag = 'scratch operand']
  #allocation3 [shape = 'f32[8,128]{1,0:T(8,128)}', space=vmem, size = 0x1000, scoped, tag = 'scratch operand']
  #allocation4 [shape = 'f32[8,128]{1,0:T(8,128)}', space=vmem, size = 0x1000, scoped, tag = 'scratch operand']
  #allocation12 [shape = 's32[]', space=sflag, size = 0x4, offset = 0, fixed_abs, tag = 'sflag constant byte address 0x0 - dummy sync flag']
  #allocation13 [shape = 's32[]', space=sflag, size = 0x4, offset = 0, fixed_abs, tag = 'sflag constant byte address 0x0 - dummy sync flag']
  #allocation14 [shape = 'u32[]', space=smem, size = 0x4, offset = 0x44, fixed_abs, tag = 'smem constant byte address 0x44 - assertion arg 0']
  #allocation15 [shape = 'u32[]', space=smem, size = 0x4, offset = 0x48, fixed_abs, tag = 'smem constant byte address 0x48 - assertion arg 1']
  %s0 = inlined_call_operand.hbm [shape: f32[8,8,512], index: 0, kind: input, shape index: {}]
  %s1 = inlined_call_operand.hbm [shape: f32[128,512], index: 1, kind: input, shape index: {}]
  %s2 = inlined_call_operand.hbm [shape: f32[1,8,128], index: 2, kind: output, shape index: {0}]
  %s3 = inlined_call_operand.hbm [shape: f32[1,8,128], index: 3, kind: output, shape index: {1}]
  %4 = xla_tuple %s2, %s3
  %s5 = sld [smem:[#allocation0]]
  $region39: #{tpu_custom_call.1} parent=0
    _
  %s7 = ssub.s32 1, %s5
  %s8 = scalar_select 0, %s7, %s5
  $region1: #{tpu_custom_call.1} parent=0
    #allocation5 [shape = 'u8[131072]{0}', space=vmem, size = 0x20000, scoped, tag = 'input window, operand 0, single buffered']
    #allocation6 [shape = 's32[1]{0}', space=sflag, size = 0x4, scoped, tag = 'scoped memory for tpu_custom_call.1']
    #allocation7 [shape = 's32[1]{0}', space=sflag, size = 0x4, scoped, tag = 'scoped memory for tpu_custom_call.1']
    #allocation8 [shape = 'u8[4096]{0}', space=vmem, size = 0x1000, scoped, tag = 'output window, operand 0, single buffered']
    #allocation9 [shape = 'u8[4096]{0}', space=vmem, size = 0x1000, scoped, tag = 'output window, operand 1, single buffered']
    #allocation10 [shape = 's32[1]{0}', space=sflag, size = 0x4, scoped, tag = 'scoped memory for tpu_custom_call.1']
    %9 = vsyncpa [#allocation6], 0
    %10 = vsyncpa [#allocation7], 0
    %11 = vsyncpa [#allocation10], 0
    // Predicated region
    $region2: #{tpu_custom_call.1} parent=1 // pred_check
      _
    $region3: #{tpu_custom_call.1} parent=1 // pred_check_branch
      %13 = sbr.rel (0) target = $region5
    $region4: #{tpu_custom_call.1} parent=1 // pred_region
      %s15 = ssub.s32 4096, 4096
      %16 = vsyncadd [#allocation6], %s15
      %s17 = sshll.u32 [#allocation5], 4
      %s18 = int_to_ptr.vmem [resolvable:$true] %s17
      %23 = dma.hbm_to_vmem [thread:$0]  %s0, 4096, %s18, [#allocation6], 512, 512, 32
    $region5: #{tpu_custom_call.1} parent=1 // pred_fallthru
      _
    // Predicated region
    $region6: #{tpu_custom_call.1} parent=1 // pred_check
      _
    $region7: #{tpu_custom_call.1} parent=1 // pred_check_branch
      %25 = sbr.rel (0) target = $region9
    $region8: #{tpu_custom_call.1} parent=1 // pred_region
      %26 = dma.done [#allocation6], 4096
    $region9: #{tpu_custom_call.1} parent=1 // pred_fallthru
      _
    %p27 = scmp.eq.s32.totalorder 0, 0
    // Predicated region
    $region10: #{tpu_custom_call.1} parent=1 // pred_check
      %p28 = pneg %p27
    $region11: #{tpu_custom_call.1} parent=1 // pred_check_branch
      %30 = sbr.rel (%p28) target = $region13
    $region12: #{tpu_custom_call.1} parent=1 // pred_region
      $region14: #{tpu_custom_call.1} parent=12
        #allocation11 [shape = 's32[1]{0}', space=sflag, size = 0x4, scoped, tag = 'scoped memory for tpu_custom_call.1']
        // Predicated region
        $region15: #{tpu_custom_call.1} parent=14 // pred_check
          _
        $region16: #{tpu_custom_call.1} parent=14 // pred_check_branch
          %32 = sbr.rel target = $region18
        $region17: #{tpu_custom_call.1} parent=14 // pred_region
          %33 = sst [smem:[#allocation14]] [#allocation13]
          %34 = sst [smem:[#allocation15]] [#allocation12]
        $region18: #{tpu_custom_call.1} parent=14 // pred_fallthru
          _
        %36 = shalt.err (0)
        %s38 = sshll.u32 [#allocation2], 4
        %s39 = int_to_ptr.vmem [resolvable:$true] %s38
        %41 = dma.hbm_to_vmem [thread:$0]  %s1, 8192, %s39, [#allocation11]
        %s42 = smul.u32 8, 16
        %s43 = smul.u32 %s42, 4
        %s44 = sshll.u32 %s43, 4
        %45 = dma.done [#allocation11], %s44
      %46 = vst [vmem:[#allocation3] sm:$0xff] 0.0
      %47 = vst [vmem:[#allocation4] sm:$0xff] 0.0
    $region13: #{tpu_custom_call.1} parent=1 // pred_fallthru
      _
    %v48 = vld [vmem:[#allocation2] sm:$0xff]
    %v49 = vld [vmem:[#allocation2 + $0x8] sm:$0xff]
    %v50 = vld [vmem:[#allocation2 + $0x10] sm:$0xff]
    %v51 = vld [vmem:[#allocation2 + $0x18] sm:$0xff]
    %v52 = vld [vmem:[#allocation2 + $0x20] sm:$0xff]
    %v53 = vld [vmem:[#allocation2 + $0x28] sm:$0xff]
    %v54 = vld [vmem:[#allocation2 + $0x30] sm:$0xff]
    %v55 = vld [vmem:[#allocation2 + $0x38] sm:$0xff]
    %v56 = vld [vmem:[#allocation2 + $0x40] sm:$0xff]
    %v57 = vld [vmem:[#allocation2 + $0x48] sm:$0xff]
    %v58 = vld [vmem:[#allocation2 + $0x50] sm:$0xff]
    %v59 = vld [vmem:[#allocation2 + $0x58] sm:$0xff]
    %v60 = vld [vmem:[#allocation2 + $0x60] sm:$0xff]
    %v61 = vld [vmem:[#allocation2 + $0x68] sm:$0xff]
    %v62 = vld [vmem:[#allocation2 + $0x70] sm:$0xff]
    %v63 = vld [vmem:[#allocation2 + $0x78] sm:$0xff]
    %v64 = vld [vmem:[#allocation2 + $0x80] sm:$0xff]
    %v65 = vld [vmem:[#allocation2 + $0x88] sm:$0xff]
    %v66 = vld [vmem:[#allocation2 + $0x90] sm:$0xff]
    %v67 = vld [vmem:[#allocation2 + $0x98] sm:$0xff]
    %v68 = vld [vmem:[#allocation2 + $0xa0] sm:$0xff]
    %v69 = vld [vmem:[#allocation2 + $0xa8] sm:$0xff]
    %v70 = vld [vmem:[#allocation2 + $0xb0] sm:$0xff]
    %v71 = vld [vmem:[#allocation2 + $0xb8] sm:$0xff]
    %v72 = vld [vmem:[#allocation2 + $0xc0] sm:$0xff]
    %v73 = vld [vmem:[#allocation2 + $0xc8] sm:$0xff]
    %v74 = vld [vmem:[#allocation2 + $0xd0] sm:$0xff]
    %v75 = vld [vmem:[#allocation2 + $0xd8] sm:$0xff]
    %v76 = vld [vmem:[#allocation2 + $0xe0] sm:$0xff]
    %v77 = vld [vmem:[#allocation2 + $0xe8] sm:$0xff]
    %v78 = vld [vmem:[#allocation2 + $0xf0] sm:$0xff]
    %v79 = vld [vmem:[#allocation2 + $0xf8] sm:$0xff]
    %v80 = vld [vmem:[#allocation2 + $0x100] sm:$0xff]
    %v81 = vld [vmem:[#allocation2 + $0x108] sm:$0xff]
    %v82 = vld [vmem:[#allocation2 + $0x110] sm:$0xff]
    %v83 = vld [vmem:[#allocation2 + $0x118] sm:$0xff]
    %v84 = vld [vmem:[#allocation2 + $0x120] sm:$0xff]
    %v85 = vld [vmem:[#allocation2 + $0x128] sm:$0xff]
    %v86 = vld [vmem:[#allocation2 + $0x130] sm:$0xff]
    %v87 = vld [vmem:[#allocation2 + $0x138] sm:$0xff]
    %v88 = vld [vmem:[#allocation2 + $0x140] sm:$0xff]
    %v89 = vld [vmem:[#allocation2 + $0x148] sm:$0xff]
    %v90 = vld [vmem:[#allocation2 + $0x150] sm:$0xff]
    %v91 = vld [vmem:[#allocation2 + $0x158] sm:$0xff]
    %v92 = vld [vmem:[#allocation2 + $0x160] sm:$0xff]
    %v93 = vld [vmem:[#allocation2 + $0x168] sm:$0xff]
    %v94 = vld [vmem:[#allocation2 + $0x170] sm:$0xff]
    %v95 = vld [vmem:[#allocation2 + $0x178] sm:$0xff]
    %v96 = vld [vmem:[#allocation2 + $0x180] sm:$0xff]
    %v97 = vld [vmem:[#allocation2 + $0x188] sm:$0xff]
    %v98 = vld [vmem:[#allocation2 + $0x190] sm:$0xff]
    %v99 = vld [vmem:[#allocation2 + $0x198] sm:$0xff]
    %v100 = vld [vmem:[#allocation2 + $0x1a0] sm:$0xff]
    %v101 = vld [vmem:[#allocation2 + $0x1a8] sm:$0xff]
    %v102 = vld [vmem:[#allocation2 + $0x1b0] sm:$0xff]
    %v103 = vld [vmem:[#allocation2 + $0x1b8] sm:$0xff]
    %v104 = vld [vmem:[#allocation2 + $0x1c0] sm:$0xff]
    %v105 = vld [vmem:[#allocation2 + $0x1c8] sm:$0xff]
    %v106 = vld [vmem:[#allocation2 + $0x1d0] sm:$0xff]
    %v107 = vld [vmem:[#allocation2 + $0x1d8] sm:$0xff]
    %v108 = vld [vmem:[#allocation2 + $0x1e0] sm:$0xff]
    %v109 = vld [vmem:[#allocation2 + $0x1e8] sm:$0xff]
    %v110 = vld [vmem:[#allocation2 + $0x1f0] sm:$0xff]
    %v111 = vld [vmem:[#allocation2 + $0x1f8] sm:$0xff]
    %v112 = vld [vmem:[#allocation3] sm:$0xff]
    %v113 = vld [vmem:[#allocation4] sm:$0xff]
    %v114 = vld [vmem:[#allocation5] sm:$0xff]
    %v115 = vld [vmem:[#allocation5 + $0x8] sm:$0xff]
    %v116 = vld [vmem:[#allocation5 + $0x10] sm:$0xff]
    %v117 = vld [vmem:[#allocation5 + $0x18] sm:$0xff]
    %118 = vmatprep.subr.mxu0 %v49
    %119 = vmatpush1.msra.mxu0 %v48
    %120 = vmatprep.subr.mxu0 %v53
    %121 = vmatpush1.msra.mxu0 %v52
    %122 = vmatprep.subr.mxu0 %v57
    %123 = vmatpush1.msra.mxu0 %v56
    %124 = vmatprep.subr.mxu0 %v61
    %125 = vmatpush1.msra.mxu0 %v60
    %126 = vmatprep.subr.mxu0 %v65
    %127 = vmatpush1.msra.mxu0 %v64
    %128 = vmatprep.subr.mxu0 %v69
    %129 = vmatpush1.msra.mxu0 %v68
    %130 = vmatprep.subr.mxu0 %v73
    %131 = vmatpush1.msra.mxu0 %v72
    %132 = vmatprep.subr.mxu0 %v77
    %133 = vmatpush1.msra.mxu0 %v76
    %134 = vmatprep.subr.mxu0 %v81
    %135 = vmatpush1.msra.mxu0 %v80
    %136 = vmatprep.subr.mxu0 %v85
    %137 = vmatpush1.msra.mxu0 %v84
    %138 = vmatprep.subr.mxu0 %v89
    %139 = vmatpush1.msra.mxu0 %v88
    %140 = vmatprep.subr.mxu0 %v93
    %141 = vmatpush1.msra.mxu0 %v92
    %142 = vmatprep.subr.mxu0 %v97
    %143 = vmatpush1.msra.mxu0 %v96
    %144 = vmatprep.subr.mxu0 %v101
    %145 = vmatpush1.msra.mxu0 %v100
    %146 = vmatprep.subr.mxu0 %v105
    %147 = vmatpush1.msra.mxu0 %v104
    %148 = vmatprep.subr.mxu0 %v109
    %149 = vmatpush1.msra.mxu0 %v108
    %150 = vmatprep.subr.mxu0 0.0
    %151 = vmatpush1.msra.mxu0 0.0
    %152 = vmatprep.subr.mxu0 0.0
    %153 = vmatpush1.msra.mxu0 0.0
    %154 = vmatprep.subr.mxu0 0.0
    %155 = vmatpush1.msra.mxu0 0.0
    %156 = vmatprep.subr.mxu0 0.0
    %157 = vmatpush1.msra.mxu0 0.0
    %158 = vmatprep.subr.mxu0 0.0
    %159 = vmatpush1.msra.mxu0 0.0
    %160 = vmatprep.subr.mxu0 0.0
    %161 = vmatpush1.msra.mxu0 0.0
    %162 = vmatprep.subr.mxu0 0.0
    %163 = vmatpush1.msra.mxu0 0.0
    %164 = vmatprep.subr.mxu0 0.0
    %165 = vmatpush1.msra.mxu0 0.0
    %166 = vmatprep.subr.mxu0 0.0
    %167 = vmatpush1.msra.mxu0 0.0
    %168 = vmatprep.subr.mxu0 0.0
    %169 = vmatpush1.msra.mxu0 0.0
    %170 = vmatprep.subr.mxu0 0.0
    %171 = vmatpush1.msra.mxu0 0.0
    %172 = vmatprep.subr.mxu0 0.0
    %173 = vmatpush1.msra.mxu0 0.0
    %174 = vmatprep.subr.mxu0 0.0
    %175 = vmatpush1.msra.mxu0 0.0
    %176 = vmatprep.subr.mxu0 0.0
    %177 = vmatpush1.msra.mxu0 0.0
    %178 = vmatprep.subr.mxu0 0.0
    %179 = vmatpush1.msra.mxu0 0.0
    %180 = vmatprep.subr.mxu0 0.0
    %181 = vmatpush1.msra.mxu0 0.0
    %182 = vmatprep.mubr.f32.mxu0 0.0
    %183 = vmatmul.mubr.f32.gmra.mrb[0].mxu0 %v112
    %v184 = vpop.f32.mrb[0].mxu0
    %v185 = vadd.f32 0.0, %v184
    %v186 = vpop.f32.mrb[0].mxu0
    %v187 = vadd.f32 0.0, %v186
    %188 = vdwg.mxu0
    %189 = vmatprep.subr.mxu0 %v51
    %190 = vmatpush1.msra.mxu0 %v50
    %191 = vmatprep.subr.mxu0 %v55
    %192 = vmatpush1.msra.mxu0 %v54
    %193 = vmatprep.subr.mxu0 %v59
    %194 = vmatpush1.msra.mxu0 %v58
    %195 = vmatprep.subr.mxu0 %v63
    %196 = vmatpush1.msra.mxu0 %v62
    %197 = vmatprep.subr.mxu0 %v67
    %198 = vmatpush1.msra.mxu0 %v66
    %199 = vmatprep.subr.mxu0 %v71
    %200 = vmatpush1.msra.mxu0 %v70
    %201 = vmatprep.subr.mxu0 %v75
    %202 = vmatpush1.msra.mxu0 %v74
    %203 = vmatprep.subr.mxu0 %v79
    %204 = vmatpush1.msra.mxu0 %v78
    %205 = vmatprep.subr.mxu0 %v83
    %206 = vmatpush1.msra.mxu0 %v82
    %207 = vmatprep.subr.mxu0 %v87
    %208 = vmatpush1.msra.mxu0 %v86
    %209 = vmatprep.subr.mxu0 %v91
    %210 = vmatpush1.msra.mxu0 %v90
    %211 = vmatprep.subr.mxu0 %v95
    %212 = vmatpush1.msra.mxu0 %v94
    %213 = vmatprep.subr.mxu0 %v99
    %214 = vmatpush1.msra.mxu0 %v98
    %215 = vmatprep.subr.mxu0 %v103
    %216 = vmatpush1.msra.mxu0 %v102
    %217 = vmatprep.subr.mxu0 %v107
    %218 = vmatpush1.msra.mxu0 %v106
    %219 = vmatprep.subr.mxu0 %v111
    %220 = vmatpush1.msra.mxu0 %v110
    %221 = vmatprep.subr.mxu0 0.0
    %222 = vmatpush1.msra.mxu0 0.0
    %223 = vmatprep.subr.mxu0 0.0
    %224 = vmatpush1.msra.mxu0 0.0
    %225 = vmatprep.subr.mxu0 0.0
    %226 = vmatpush1.msra.mxu0 0.0
    %227 = vmatprep.subr.mxu0 0.0
    %228 = vmatpush1.msra.mxu0 0.0
    %229 = vmatprep.subr.mxu0 0.0
    %230 = vmatpush1.msra.mxu0 0.0
    %231 = vmatprep.subr.mxu0 0.0
    %232 = vmatpush1.msra.mxu0 0.0
    %233 = vmatprep.subr.mxu0 0.0
    %234 = vmatpush1.msra.mxu0 0.0
    %235 = vmatprep.subr.mxu0 0.0
    %236 = vmatpush1.msra.mxu0 0.0
    %237 = vmatprep.subr.mxu0 0.0
    %238 = vmatpush1.msra.mxu0 0.0
    %239 = vmatprep.subr.mxu0 0.0
    %240 = vmatpush1.msra.mxu0 0.0
    %241 = vmatprep.subr.mxu0 0.0
    %242 = vmatpush1.msra.mxu0 0.0
    %243 = vmatprep.subr.mxu0 0.0
    %244 = vmatpush1.msra.mxu0 0.0
    %245 = vmatprep.subr.mxu0 0.0
    %246 = vmatpush1.msra.mxu0 0.0
    %247 = vmatprep.subr.mxu0 0.0
    %248 = vmatpush1.msra.mxu0 0.0
    %249 = vmatprep.subr.mxu0 0.0
    %250 = vmatpush1.msra.mxu0 0.0
    %251 = vmatprep.subr.mxu0 0.0
    %252 = vmatpush1.msra.mxu0 0.0
    %253 = vmatprep.mubr.f32.mxu0 0.0
    %254 = vmatmul.mubr.f32.gmra.mrb[0].mxu0 %v112
    %v255 = vpop.f32.mrb[0].mxu0
    %v256 = vadd.f32 0.0, %v255
    %v257 = vpop.f32.mrb[0].mxu0
    %v258 = vadd.f32 0.0, %v257
    %259 = vdwg.mxu0
    %v260 = vadd.f32 %v114, %v185
    %v261 = vadd.f32 %v115, %v187
    %v262 = vadd.f32 %v116, %v256
    %v263 = vadd.f32 %v117, %v258
    %v264 = vxor.u32 %v260, 2147483648
    %v265 = vmul.f32 %v264, 1.442695
    %v266 = vpow.pop %v265
    %v267 = vadd.f32 %v266, 1.0
    %v268 = vrcp.pop %v267
    %v269 = vmul.f32 1.0, %v268
    %v270 = vxor.u32 %v261, 2147483648
    %v271 = vmul.f32 %v270, 1.442695
    %v272 = vpow.pop %v271
    %v273 = vadd.f32 %v272, 1.0
    %v274 = vrcp.pop %v273
    %v275 = vmul.f32 1.0, %v274
    %v276 = vtanh.pop %v262
    %v277 = vxor.u32 %v263, 2147483648
    %v278 = vmul.f32 %v277, 1.442695
    %v279 = vpow.pop %v278
    %v280 = vadd.f32 %v279, 1.0
    %v281 = vrcp.pop %v280
    %v282 = vmul.f32 1.0, %v281
    %v283 = vmul.f32 %v275, %v113
    %v284 = vmul.f32 %v269, %v276
    %v285 = vadd.f32 %v283, %v284
    %v286 = vtanh.pop %v285
    %v287 = vmul.f32 %v282, %v286
    %s288 = scalar_lea.vmem [#allocation5], 32
    %v289 = vld [vmem:[%s288] sm:$0xff]
    %v290 = vld [vmem:[%s288 + $0x8] sm:$0xff]
    %v291 = vld [vmem:[%s288 + $0x10] sm:$0xff]
    %v292 = vld [vmem:[%s288 + $0x18] sm:$0xff]
    %293 = vmatprep.subr.mxu0 %v49
    %294 = vmatpush1.msra.mxu0 %v48
    %295 = vmatprep.subr.mxu0 %v53
    %296 = vmatpush1.msra.mxu0 %v52
    %297 = vmatprep.subr.mxu0 %v57
    %298 = vmatpush1.msra.mxu0 %v56
    %299 = vmatprep.subr.mxu0 %v61
    %300 = vmatpush1.msra.mxu0 %v60
    %301 = vmatprep.subr.mxu0 %v65
    %302 = vmatpush1.msra.mxu0 %v64
    %303 = vmatprep.subr.mxu0 %v69
    %304 = vmatpush1.msra.mxu0 %v68
    %305 = vmatprep.subr.mxu0 %v73
    %306 = vmatpush1.msra.mxu0 %v72
    %307 = vmatprep.subr.mxu0 %v77
    %308 = vmatpush1.msra.mxu0 %v76
    %309 = vmatprep.subr.mxu0 %v81
    %310 = vmatpush1.msra.mxu0 %v80
    %311 = vmatprep.subr.mxu0 %v85
    %312 = vmatpush1.msra.mxu0 %v84
    %313 = vmatprep.subr.mxu0 %v89
    %314 = vmatpush1.msra.mxu0 %v88
    %315 = vmatprep.subr.mxu0 %v93
    %316 = vmatpush1.msra.mxu0 %v92
    %317 = vmatprep.subr.mxu0 %v97
    %318 = vmatpush1.msra.mxu0 %v96
    %319 = vmatprep.subr.mxu0 %v101
    %320 = vmatpush1.msra.mxu0 %v100
    %321 = vmatprep.subr.mxu0 %v105
    %322 = vmatpush1.msra.mxu0 %v104
    %323 = vmatprep.subr.mxu0 %v109
    %324 = vmatpush1.msra.mxu0 %v108
    %325 = vmatprep.subr.mxu0 0.0
    %326 = vmatpush1.msra.mxu0 0.0
    %327 = vmatprep.subr.mxu0 0.0
    %328 = vmatpush1.msra.mxu0 0.0
    %329 = vmatprep.subr.mxu0 0.0
    %330 = vmatpush1.msra.mxu0 0.0
    %331 = vmatprep.subr.mxu0 0.0
    %332 = vmatpush1.msra.mxu0 0.0
    %333 = vmatprep.subr.mxu0 0.0
    %334 = vmatpush1.msra.mxu0 0.0
    %335 = vmatprep.subr.mxu0 0.0
    %336 = vmatpush1.msra.mxu0 0.0
    %337 = vmatprep.subr.mxu0 0.0
    %338 = vmatpush1.msra.mxu0 0.0
    %339 = vmatprep.subr.mxu0 0.0
    %340 = vmatpush1.msra.mxu0 0.0
    %341 = vmatprep.subr.mxu0 0.0
    %342 = vmatpush1.msra.mxu0 0.0
    %343 = vmatprep.subr.mxu0 0.0
    %344 = vmatpush1.msra.mxu0 0.0
    %345 = vmatprep.subr.mxu0 0.0
    %346 = vmatpush1.msra.mxu0 0.0
    %347 = vmatprep.subr.mxu0 0.0
    %348 = vmatpush1.msra.mxu0 0.0
    %349 = vmatprep.subr.mxu0 0.0
    %350 = vmatpush1.msra.mxu0 0.0
    %351 = vmatprep.subr.mxu0 0.0
    %352 = vmatpush1.msra.mxu0 0.0
    %353 = vmatprep.subr.mxu0 0.0
    %354 = vmatpush1.msra.mxu0 0.0
    %355 = vmatprep.subr.mxu0 0.0
    %356 = vmatpush1.msra.mxu0 0.0
    %357 = vmatprep.mubr.f32.mxu0 0.0
    %358 = vmatmul.mubr.f32.gmra.mrb[0].mxu0 %v287
    %v359 = vpop.f32.mrb[0].mxu0
    %v360 = vadd.f32 0.0, %v359
    %v361 = vpop.f32.mrb[0].mxu0
    %v362 = vadd.f32 0.0, %v361
    %363 = vdwg.mxu0
    %364 = vmatprep.subr.mxu0 %v51
    %365 = vmatpush1.msra.mxu0 %v50
    %366 = vmatprep.subr.mxu0 %v55
    %367 = vmatpush1.msra.mxu0 %v54
    %368 = vmatprep.subr.mxu0 %v59
    %369 = vmatpush1.msra.mxu0 %v58
    %370 = vmatprep.subr.mxu0 %v63
    %371 = vmatpush1.msra.mxu0 %v62
    %372 = vmatprep.subr.mxu0 %v67
    %373 = vmatpush1.msra.mxu0 %v66
    %374 = vmatprep.subr.mxu0 %v71
    %375 = vmatpush1.msra.mxu0 %v70
    %376 = vmatprep.subr.mxu0 %v75
    %377 = vmatpush1.msra.mxu0 %v74
    %378 = vmatprep.subr.mxu0 %v79
    %379 = vmatpush1.msra.mxu0 %v78
    %380 = vmatprep.subr.mxu0 %v83
    %381 = vmatpush1.msra.mxu0 %v82
    %382 = vmatprep.subr.mxu0 %v87
    %383 = vmatpush1.msra.mxu0 %v86
    %384 = vmatprep.subr.mxu0 %v91
    %385 = vmatpush1.msra.mxu0 %v90
    %386 = vmatprep.subr.mxu0 %v95
    %387 = vmatpush1.msra.mxu0 %v94
    %388 = vmatprep.subr.mxu0 %v99
    %389 = vmatpush1.msra.mxu0 %v98
    %390 = vmatprep.subr.mxu0 %v103
    %391 = vmatpush1.msra.mxu0 %v102
    %392 = vmatprep.subr.mxu0 %v107
    %393 = vmatpush1.msra.mxu0 %v106
    %394 = vmatprep.subr.mxu0 %v111
    %395 = vmatpush1.msra.mxu0 %v110
    %396 = vmatprep.subr.mxu0 0.0
    %397 = vmatpush1.msra.mxu0 0.0
    %398 = vmatprep.subr.mxu0 0.0
    %399 = vmatpush1.msra.mxu0 0.0
    %400 = vmatprep.subr.mxu0 0.0
    %401 = vmatpush1.msra.mxu0 0.0
    %402 = vmatprep.subr.mxu0 0.0
    %403 = vmatpush1.msra.mxu0 0.0
    %404 = vmatprep.subr.mxu0 0.0
    %405 = vmatpush1.msra.mxu0 0.0
    %406 = vmatprep.subr.mxu0 0.0
    %407 = vmatpush1.msra.mxu0 0.0
    %408 = vmatprep.subr.mxu0 0.0
    %409 = vmatpush1.msra.mxu0 0.0
    %410 = vmatprep.subr.mxu0 0.0
    %411 = vmatpush1.msra.mxu0 0.0
    %412 = vmatprep.subr.mxu0 0.0
    %413 = vmatpush1.msra.mxu0 0.0
    %414 = vmatprep.subr.mxu0 0.0
    %415 = vmatpush1.msra.mxu0 0.0
    %416 = vmatprep.subr.mxu0 0.0
    %417 = vmatpush1.msra.mxu0 0.0
    %418 = vmatprep.subr.mxu0 0.0
    %419 = vmatpush1.msra.mxu0 0.0
    %420 = vmatprep.subr.mxu0 0.0
    %421 = vmatpush1.msra.mxu0 0.0
    %422 = vmatprep.subr.mxu0 0.0
    %423 = vmatpush1.msra.mxu0 0.0
    %424 = vmatprep.subr.mxu0 0.0
    %425 = vmatpush1.msra.mxu0 0.0
    %426 = vmatprep.subr.mxu0 0.0
    %427 = vmatpush1.msra.mxu0 0.0
    %428 = vmatprep.mubr.f32.mxu0 0.0
    %429 = vmatmul.mubr.f32.gmra.mrb[0].mxu0 %v287
    %v430 = vpop.f32.mrb[0].mxu0
    %v431 = vadd.f32 0.0, %v430
    %v432 = vpop.f32.mrb[0].mxu0
    %v433 = vadd.f32 0.0, %v432
    %434 = vdwg.mxu0
    %v435 = vadd.f32 %v289, %v360
    %v436 = vadd.f32 %v290, %v362
    %v437 = vadd.f32 %v291, %v431
    %v438 = vadd.f32 %v292, %v433
    %v439 = vxor.u32 %v435, 2147483648
    %v440 = vmul.f32 %v439, 1.442695
    %v441 = vpow.pop %v440
    %v442 = vadd.f32 %v441, 1.0
    %v443 = vrcp.pop %v442
    %v444 = vmul.f32 1.0, %v443
    %v445 = vxor.u32 %v436, 2147483648
    %v446 = vmul.f32 %v445, 1.442695
    %v447 = vpow.pop %v446
    %v448 = vadd.f32 %v447, 1.0
    %v449 = vrcp.pop %v448
    %v450 = vmul.f32 1.0, %v449
    %v451 = vtanh.pop %v437
    %v452 = vxor.u32 %v438, 2147483648
    %v453 = vmul.f32 %v452, 1.442695
    %v454 = vpow.pop %v453
    %v455 = vadd.f32 %v454, 1.0
    %v456 = vrcp.pop %v455
    %v457 = vmul.f32 1.0, %v456
    %v458 = vmul.f32 %v450, %v285
    %v459 = vmul.f32 %v444, %v451
    %v460 = vadd.f32 %v458, %v459
    %v461 = vtanh.pop %v460
    %v462 = vmul.f32 %v457, %v461
    %s463 = scalar_lea.vmem [#allocation5], 64
    %v464 = vld [vmem:[%s463] sm:$0xff]
    %v465 = vld [vmem:[%s463 + $0x8] sm:$0xff]
    %v466 = vld [vmem:[%s463 + $0x10] sm:$0xff]
    %v467 = vld [vmem:[%s463 + $0x18] sm:$0xff]
    %468 = vmatprep.subr.mxu0 %v49
    %469 = vmatpush1.msra.mxu0 %v48
    %470 = vmatprep.subr.mxu0 %v53
    %471 = vmatpush1.msra.mxu0 %v52
    %472 = vmatprep.subr.mxu0 %v57
    %473 = vmatpush1.msra.mxu0 %v56
    %474 = vmatprep.subr.mxu0 %v61
    %475 = vmatpush1.msra.mxu0 %v60
    %476 = vmatprep.subr.mxu0 %v65
    %477 = vmatpush1.msra.mxu0 %v64
    %478 = vmatprep.subr.mxu0 %v69
    %479 = vmatpush1.msra.mxu0 %v68
    %480 = vmatprep.subr.mxu0 %v73
    %481 = vmatpush1.msra.mxu0 %v72
    %482 = vmatprep.subr.mxu0 %v77
    %483 = vmatpush1.msra.mxu0 %v76
    %484 = vmatprep.subr.mxu0 %v81
    %485 = vmatpush1.msra.mxu0 %v80
    %486 = vmatprep.subr.mxu0 %v85
    %487 = vmatpush1.msra.mxu0 %v84
    %488 = vmatprep.subr.mxu0 %v89
    %489 = vmatpush1.msra.mxu0 %v88
    %490 = vmatprep.subr.mxu0 %v93
    %491 = vmatpush1.msra.mxu0 %v92
    %492 = vmatprep.subr.mxu0 %v97
    %493 = vmatpush1.msra.mxu0 %v96
    %494 = vmatprep.subr.mxu0 %v101
    %495 = vmatpush1.msra.mxu0 %v100
    %496 = vmatprep.subr.mxu0 %v105
    %497 = vmatpush1.msra.mxu0 %v104
    %498 = vmatprep.subr.mxu0 %v109
    %499 = vmatpush1.msra.mxu0 %v108
    %500 = vmatprep.subr.mxu0 0.0
    %501 = vmatpush1.msra.mxu0 0.0
    %502 = vmatprep.subr.mxu0 0.0
    %503 = vmatpush1.msra.mxu0 0.0
    %504 = vmatprep.subr.mxu0 0.0
    %505 = vmatpush1.msra.mxu0 0.0
    %506 = vmatprep.subr.mxu0 0.0
    %507 = vmatpush1.msra.mxu0 0.0
    %508 = vmatprep.subr.mxu0 0.0
    %509 = vmatpush1.msra.mxu0 0.0
    %510 = vmatprep.subr.mxu0 0.0
    %511 = vmatpush1.msra.mxu0 0.0
    %512 = vmatprep.subr.mxu0 0.0
    %513 = vmatpush1.msra.mxu0 0.0
    %514 = vmatprep.subr.mxu0 0.0
    %515 = vmatpush1.msra.mxu0 0.0
    %516 = vmatprep.subr.mxu0 0.0
    %517 = vmatpush1.msra.mxu0 0.0
    %518 = vmatprep.subr.mxu0 0.0
    %519 = vmatpush1.msra.mxu0 0.0
    %520 = vmatprep.subr.mxu0 0.0
    %521 = vmatpush1.msra.mxu0 0.0
    %522 = vmatprep.subr.mxu0 0.0
    %523 = vmatpush1.msra.mxu0 0.0
    %524 = vmatprep.subr.mxu0 0.0
    %525 = vmatpush1.msra.mxu0 0.0
    %526 = vmatprep.subr.mxu0 0.0
    %527 = vmatpush1.msra.mxu0 0.0
    %528 = vmatprep.subr.mxu0 0.0
    %529 = vmatpush1.msra.mxu0 0.0
    %530 = vmatprep.subr.mxu0 0.0
    %531 = vmatpush1.msra.mxu0 0.0
    %532 = vmatprep.mubr.f32.mxu0 0.0
    %533 = vmatmul.mubr.f32.gmra.mrb[0].mxu0 %v462
    %v534 = vpop.f32.mrb[0].mxu0
    %v535 = vadd.f32 0.0, %v534
    %v536 = vpop.f32.mrb[0].mxu0
    %v537 = vadd.f32 0.0, %v536
    %538 = vdwg.mxu0
    %539 = vmatprep.subr.mxu0 %v51
    %540 = vmatpush1.msra.mxu0 %v50
    %541 = vmatprep.subr.mxu0 %v55
    %542 = vmatpush1.msra.mxu0 %v54
    %543 = vmatprep.subr.mxu0 %v59
    %544 = vmatpush1.msra.mxu0 %v58
    %545 = vmatprep.subr.mxu0 %v63
    %546 = vmatpush1.msra.mxu0 %v62
    %547 = vmatprep.subr.mxu0 %v67
    %548 = vmatpush1.msra.mxu0 %v66
    %549 = vmatprep.subr.mxu0 %v71
    %550 = vmatpush1.msra.mxu0 %v70
    %551 = vmatprep.subr.mxu0 %v75
    %552 = vmatpush1.msra.mxu0 %v74
    %553 = vmatprep.subr.mxu0 %v79
    %554 = vmatpush1.msra.mxu0 %v78
    %555 = vmatprep.subr.mxu0 %v83
    %556 = vmatpush1.msra.mxu0 %v82
    %557 = vmatprep.subr.mxu0 %v87
    %558 = vmatpush1.msra.mxu0 %v86
    %559 = vmatprep.subr.mxu0 %v91
    %560 = vmatpush1.msra.mxu0 %v90
    %561 = vmatprep.subr.mxu0 %v95
    %562 = vmatpush1.msra.mxu0 %v94
    %563 = vmatprep.subr.mxu0 %v99
    %564 = vmatpush1.msra.mxu0 %v98
    %565 = vmatprep.subr.mxu0 %v103
    %566 = vmatpush1.msra.mxu0 %v102
    %567 = vmatprep.subr.mxu0 %v107
    %568 = vmatpush1.msra.mxu0 %v106
    %569 = vmatprep.subr.mxu0 %v111
    %570 = vmatpush1.msra.mxu0 %v110
    %571 = vmatprep.subr.mxu0 0.0
    %572 = vmatpush1.msra.mxu0 0.0
    %573 = vmatprep.subr.mxu0 0.0
    %574 = vmatpush1.msra.mxu0 0.0
    %575 = vmatprep.subr.mxu0 0.0
    %576 = vmatpush1.msra.mxu0 0.0
    %577 = vmatprep.subr.mxu0 0.0
    %578 = vmatpush1.msra.mxu0 0.0
    %579 = vmatprep.subr.mxu0 0.0
    %580 = vmatpush1.msra.mxu0 0.0
    %581 = vmatprep.subr.mxu0 0.0
    %582 = vmatpush1.msra.mxu0 0.0
    %583 = vmatprep.subr.mxu0 0.0
    %584 = vmatpush1.msra.mxu0 0.0
    %585 = vmatprep.subr.mxu0 0.0
    %586 = vmatpush1.msra.mxu0 0.0
    %587 = vmatprep.subr.mxu0 0.0
    %588 = vmatpush1.msra.mxu0 0.0
    %589 = vmatprep.subr.mxu0 0.0
    %590 = vmatpush1.msra.mxu0 0.0
    %591 = vmatprep.subr.mxu0 0.0
    %592 = vmatpush1.msra.mxu0 0.0
    %593 = vmatprep.subr.mxu0 0.0
    %594 = vmatpush1.msra.mxu0 0.0
    %595 = vmatprep.subr.mxu0 0.0
    %596 = vmatpush1.msra.mxu0 0.0
    %597 = vmatprep.subr.mxu0 0.0
    %598 = vmatpush1.msra.mxu0 0.0
    %599 = vmatprep.subr.mxu0 0.0
    %600 = vmatpush1.msra.mxu0 0.0
    %601 = vmatprep.subr.mxu0 0.0
    %602 = vmatpush1.msra.mxu0 0.0
    %603 = vmatprep.mubr.f32.mxu0 0.0
    %604 = vmatmul.mubr.f32.gmra.mrb[0].mxu0 %v462
    %v605 = vpop.f32.mrb[0].mxu0
    %v606 = vadd.f32 0.0, %v605
    %v607 = vpop.f32.mrb[0].mxu0
    %v608 = vadd.f32 0.0, %v607
    %609 = vdwg.mxu0
    %v610 = vadd.f32 %v464, %v535
    %v611 = vadd.f32 %v465, %v537
    %v612 = vadd.f32 %v466, %v606
    %v613 = vadd.f32 %v467, %v608
    %v614 = vxor.u32 %v610, 2147483648
    %v615 = vmul.f32 %v614, 1.442695
    %v616 = vpow.pop %v615
    %v617 = vadd.f32 %v616, 1.0
    %v618 = vrcp.pop %v617
    %v619 = vmul.f32 1.0, %v618
    %v620 = vxor.u32 %v611, 2147483648
    %v621 = vmul.f32 %v620, 1.442695
    %v622 = vpow.pop %v621
    %v623 = vadd.f32 %v622, 1.0
    %v624 = vrcp.pop %v623
    %v625 = vmul.f32 1.0, %v624
    %v626 = vtanh.pop %v612
    %v627 = vxor.u32 %v613, 2147483648
    %v628 = vmul.f32 %v627, 1.442695
    %v629 = vpow.pop %v628
    %v630 = vadd.f32 %v629, 1.0
    %v631 = vrcp.pop %v630
    %v632 = vmul.f32 1.0, %v631
    %v633 = vmul.f32 %v625, %v460
    %v634 = vmul.f32 %v619, %v626
    %v635 = vadd.f32 %v633, %v634
    %v636 = vtanh.pop %v635
    %v637 = vmul.f32 %v632, %v636
    %s638 = scalar_lea.vmem [#allocation5], 96
    %v639 = vld [vmem:[%s638] sm:$0xff]
    %v640 = vld [vmem:[%s638 + $0x8] sm:$0xff]
    %v641 = vld [vmem:[%s638 + $0x10] sm:$0xff]
    %v642 = vld [vmem:[%s638 + $0x18] sm:$0xff]
    %643 = vmatprep.subr.mxu0 %v49
    %644 = vmatpush1.msra.mxu0 %v48
    %645 = vmatprep.subr.mxu0 %v53
    %646 = vmatpush1.msra.mxu0 %v52
    %647 = vmatprep.subr.mxu0 %v57
    %648 = vmatpush1.msra.mxu0 %v56
    %649 = vmatprep.subr.mxu0 %v61
    %650 = vmatpush1.msra.mxu0 %v60
    %651 = vmatprep.subr.mxu0 %v65
    %652 = vmatpush1.msra.mxu0 %v64
    %653 = vmatprep.subr.mxu0 %v69
    %654 = vmatpush1.msra.mxu0 %v68
    %655 = vmatprep.subr.mxu0 %v73
    %656 = vmatpush1.msra.mxu0 %v72
    %657 = vmatprep.subr.mxu0 %v77
    %658 = vmatpush1.msra.mxu0 %v76
    %659 = vmatprep.subr.mxu0 %v81
    %660 = vmatpush1.msra.mxu0 %v80
    %661 = vmatprep.subr.mxu0 %v85
    %662 = vmatpush1.msra.mxu0 %v84
    %663 = vmatprep.subr.mxu0 %v89
    %664 = vmatpush1.msra.mxu0 %v88
    %665 = vmatprep.subr.mxu0 %v93
    %666 = vmatpush1.msra.mxu0 %v92
    %667 = vmatprep.subr.mxu0 %v97
    %668 = vmatpush1.msra.mxu0 %v96
    %669 = vmatprep.subr.mxu0 %v101
    %670 = vmatpush1.msra.mxu0 %v100
    %671 = vmatprep.subr.mxu0 %v105
    %672 = vmatpush1.msra.mxu0 %v104
    %673 = vmatprep.subr.mxu0 %v109
    %674 = vmatpush1.msra.mxu0 %v108
    %675 = vmatprep.subr.mxu0 0.0
    %676 = vmatpush1.msra.mxu0 0.0
    %677 = vmatprep.subr.mxu0 0.0
    %678 = vmatpush1.msra.mxu0 0.0
    %679 = vmatprep.subr.mxu0 0.0
    %680 = vmatpush1.msra.mxu0 0.0
    %681 = vmatprep.subr.mxu0 0.0
    %682 = vmatpush1.msra.mxu0 0.0
    %683 = vmatprep.subr.mxu0 0.0
    %684 = vmatpush1.msra.mxu0 0.0
    %685 = vmatprep.subr.mxu0 0.0
    %686 = vmatpush1.msra.mxu0 0.0
    %687 = vmatprep.subr.mxu0 0.0
    %688 = vmatpush1.msra.mxu0 0.0
    %689 = vmatprep.subr.mxu0 0.0
    %690 = vmatpush1.msra.mxu0 0.0
    %691 = vmatprep.subr.mxu0 0.0
    %692 = vmatpush1.msra.mxu0 0.0
    %693 = vmatprep.subr.mxu0 0.0
    %694 = vmatpush1.msra.mxu0 0.0
    %695 = vmatprep.subr.mxu0 0.0
    %696 = vmatpush1.msra.mxu0 0.0
    %697 = vmatprep.subr.mxu0 0.0
    %698 = vmatpush1.msra.mxu0 0.0
    %699 = vmatprep.subr.mxu0 0.0
    %700 = vmatpush1.msra.mxu0 0.0
    %701 = vmatprep.subr.mxu0 0.0
    %702 = vmatpush1.msra.mxu0 0.0
    %703 = vmatprep.subr.mxu0 0.0
    %704 = vmatpush1.msra.mxu0 0.0
    %705 = vmatprep.subr.mxu0 0.0
    %706 = vmatpush1.msra.mxu0 0.0
    %707 = vmatprep.mubr.f32.mxu0 0.0
    %708 = vmatmul.mubr.f32.gmra.mrb[0].mxu0 %v637
    %v709 = vpop.f32.mrb[0].mxu0
    %v710 = vadd.f32 0.0, %v709
    %v711 = vpop.f32.mrb[0].mxu0
    %v712 = vadd.f32 0.0, %v711
    %713 = vdwg.mxu0
    %714 = vmatprep.subr.mxu0 %v51
    %715 = vmatpush1.msra.mxu0 %v50
    %716 = vmatprep.subr.mxu0 %v55
    %717 = vmatpush1.msra.mxu0 %v54
    %718 = vmatprep.subr.mxu0 %v59
    %719 = vmatpush1.msra.mxu0 %v58
    %720 = vmatprep.subr.mxu0 %v63
    %721 = vmatpush1.msra.mxu0 %v62
    %722 = vmatprep.subr.mxu0 %v67
    %723 = vmatpush1.msra.mxu0 %v66
    %724 = vmatprep.subr.mxu0 %v71
    %725 = vmatpush1.msra.mxu0 %v70
    %726 = vmatprep.subr.mxu0 %v75
    %727 = vmatpush1.msra.mxu0 %v74
    %728 = vmatprep.subr.mxu0 %v79
    %729 = vmatpush1.msra.mxu0 %v78
    %730 = vmatprep.subr.mxu0 %v83
    %731 = vmatpush1.msra.mxu0 %v82
    %732 = vmatprep.subr.mxu0 %v87
    %733 = vmatpush1.msra.mxu0 %v86
    %734 = vmatprep.subr.mxu0 %v91
    %735 = vmatpush1.msra.mxu0 %v90
    %736 = vmatprep.subr.mxu0 %v95
    %737 = vmatpush1.msra.mxu0 %v94
    %738 = vmatprep.subr.mxu0 %v99
    %739 = vmatpush1.msra.mxu0 %v98
    %740 = vmatprep.subr.mxu0 %v103
    %741 = vmatpush1.msra.mxu0 %v102
    %742 = vmatprep.subr.mxu0 %v107
    %743 = vmatpush1.msra.mxu0 %v106
    %744 = vmatprep.subr.mxu0 %v111
    %745 = vmatpush1.msra.mxu0 %v110
    %746 = vmatprep.subr.mxu0 0.0
    %747 = vmatpush1.msra.mxu0 0.0
    %748 = vmatprep.subr.mxu0 0.0
    %749 = vmatpush1.msra.mxu0 0.0
    %750 = vmatprep.subr.mxu0 0.0
    %751 = vmatpush1.msra.mxu0 0.0
    %752 = vmatprep.subr.mxu0 0.0
    %753 = vmatpush1.msra.mxu0 0.0
    %754 = vmatprep.subr.mxu0 0.0
    %755 = vmatpush1.msra.mxu0 0.0
    %756 = vmatprep.subr.mxu0 0.0
    %757 = vmatpush1.msra.mxu0 0.0
    %758 = vmatprep.subr.mxu0 0.0
    %759 = vmatpush1.msra.mxu0 0.0
    %760 = vmatprep.subr.mxu0 0.0
    %761 = vmatpush1.msra.mxu0 0.0
    %762 = vmatprep.subr.mxu0 0.0
    %763 = vmatpush1.msra.mxu0 0.0
    %764 = vmatprep.subr.mxu0 0.0
    %765 = vmatpush1.msra.mxu0 0.0
    %766 = vmatprep.subr.mxu0 0.0
    %767 = vmatpush1.msra.mxu0 0.0
    %768 = vmatprep.subr.mxu0 0.0
    %769 = vmatpush1.msra.mxu0 0.0
    %770 = vmatprep.subr.mxu0 0.0
    %771 = vmatpush1.msra.mxu0 0.0
    %772 = vmatprep.subr.mxu0 0.0
    %773 = vmatpush1.msra.mxu0 0.0
    %774 = vmatprep.subr.mxu0 0.0
    %775 = vmatpush1.msra.mxu0 0.0
    %776 = vmatprep.subr.mxu0 0.0
    %777 = vmatpush1.msra.mxu0 0.0
    %778 = vmatprep.mubr.f32.mxu0 0.0
    %779 = vmatmul.mubr.f32.gmra.mrb[0].mxu0 %v637
    %v780 = vpop.f32.mrb[0].mxu0
    %v781 = vadd.f32 0.0, %v780
    %v782 = vpop.f32.mrb[0].mxu0
    %v783 = vadd.f32 0.0, %v782
    %784 = vdwg.mxu0
    %v785 = vadd.f32 %v639, %v710
    %v786 = vadd.f32 %v640, %v712
    %v787 = vadd.f32 %v641, %v781
    %v788 = vadd.f32 %v642, %v783
    %v789 = vxor.u32 %v785, 2147483648
    %v790 = vmul.f32 %v789, 1.442695
    %v791 = vpow.pop %v790
    %v792 = vadd.f32 %v791, 1.0
    %v793 = vrcp.pop %v792
    %v794 = vmul.f32 1.0, %v793
    %v795 = vxor.u32 %v786, 2147483648
    %v796 = vmul.f32 %v795, 1.442695
    %v797 = vpow.pop %v796
    %v798 = vadd.f32 %v797, 1.0
    %v799 = vrcp.pop %v798
    %v800 = vmul.f32 1.0, %v799
    %v801 = vtanh.pop %v787
    %v802 = vxor.u32 %v788, 2147483648
    %v803 = vmul.f32 %v802, 1.442695
    %v804 = vpow.pop %v803
    %v805 = vadd.f32 %v804, 1.0
    %v806 = vrcp.pop %v805
    %v807 = vmul.f32 1.0, %v806
    %v808 = vmul.f32 %v800, %v635
    %v809 = vmul.f32 %v794, %v801
    %v810 = vadd.f32 %v808, %v809
    %v811 = vtanh.pop %v810
    %v812 = vmul.f32 %v807, %v811
    %s813 = scalar_lea.vmem [#allocation5], 128
    %v814 = vld [vmem:[%s813] sm:$0xff]
    %v815 = vld [vmem:[%s813 + $0x8] sm:$0xff]
    %v816 = vld [vmem:[%s813 + $0x10] sm:$0xff]
    %v817 = vld [vmem:[%s813 + $0x18] sm:$0xff]
    %818 = vmatprep.subr.mxu0 %v49
    %819 = vmatpush1.msra.mxu0 %v48
    %820 = vmatprep.subr.mxu0 %v53
    %821 = vmatpush1.msra.mxu0 %v52
    %822 = vmatprep.subr.mxu0 %v57
    %823 = vmatpush1.msra.mxu0 %v56
    %824 = vmatprep.subr.mxu0 %v61
    %825 = vmatpush1.msra.mxu0 %v60
    %826 = vmatprep.subr.mxu0 %v65
    %827 = vmatpush1.msra.mxu0 %v64
    %828 = vmatprep.subr.mxu0 %v69
    %829 = vmatpush1.msra.mxu0 %v68
    %830 = vmatprep.subr.mxu0 %v73
    %831 = vmatpush1.msra.mxu0 %v72
    %832 = vmatprep.subr.mxu0 %v77
    %833 = vmatpush1.msra.mxu0 %v76
    %834 = vmatprep.subr.mxu0 %v81
    %835 = vmatpush1.msra.mxu0 %v80
    %836 = vmatprep.subr.mxu0 %v85
    %837 = vmatpush1.msra.mxu0 %v84
    %838 = vmatprep.subr.mxu0 %v89
    %839 = vmatpush1.msra.mxu0 %v88
    %840 = vmatprep.subr.mxu0 %v93
    %841 = vmatpush1.msra.mxu0 %v92
    %842 = vmatprep.subr.mxu0 %v97
    %843 = vmatpush1.msra.mxu0 %v96
    %844 = vmatprep.subr.mxu0 %v101
    %845 = vmatpush1.msra.mxu0 %v100
    %846 = vmatprep.subr.mxu0 %v105
    %847 = vmatpush1.msra.mxu0 %v104
    %848 = vmatprep.subr.mxu0 %v109
    %849 = vmatpush1.msra.mxu0 %v108
    %850 = vmatprep.subr.mxu0 0.0
    %851 = vmatpush1.msra.mxu0 0.0
    %852 = vmatprep.subr.mxu0 0.0
    %853 = vmatpush1.msra.mxu0 0.0
    %854 = vmatprep.subr.mxu0 0.0
    %855 = vmatpush1.msra.mxu0 0.0
    %856 = vmatprep.subr.mxu0 0.0
    %857 = vmatpush1.msra.mxu0 0.0
    %858 = vmatprep.subr.mxu0 0.0
    %859 = vmatpush1.msra.mxu0 0.0
    %860 = vmatprep.subr.mxu0 0.0
    %861 = vmatpush1.msra.mxu0 0.0
    %862 = vmatprep.subr.mxu0 0.0
    %863 = vmatpush1.msra.mxu0 0.0
    %864 = vmatprep.subr.mxu0 0.0
    %865 = vmatpush1.msra.mxu0 0.0
    %866 = vmatprep.subr.mxu0 0.0
    %867 = vmatpush1.msra.mxu0 0.0
    %868 = vmatprep.subr.mxu0 0.0
    %869 = vmatpush1.msra.mxu0 0.0
    %870 = vmatprep.subr.mxu0 0.0
    %871 = vmatpush1.msra.mxu0 0.0
    %872 = vmatprep.subr.mxu0 0.0
    %873 = vmatpush1.msra.mxu0 0.0
    %874 = vmatprep.subr.mxu0 0.0
    %875 = vmatpush1.msra.mxu0 0.0
    %876 = vmatprep.subr.mxu0 0.0
    %877 = vmatpush1.msra.mxu0 0.0
    %878 = vmatprep.subr.mxu0 0.0
    %879 = vmatpush1.msra.mxu0 0.0
    %880 = vmatprep.subr.mxu0 0.0
    %881 = vmatpush1.msra.mxu0 0.0
    %882 = vmatprep.mubr.f32.mxu0 0.0
    %883 = vmatmul.mubr.f32.gmra.mrb[0].mxu0 %v812
    %v884 = vpop.f32.mrb[0].mxu0
    %v885 = vadd.f32 0.0, %v884
    %v886 = vpop.f32.mrb[0].mxu0
    %v887 = vadd.f32 0.0, %v886
    %888 = vdwg.mxu0
    %889 = vmatprep.subr.mxu0 %v51
    %890 = vmatpush1.msra.mxu0 %v50
    %891 = vmatprep.subr.mxu0 %v55
    %892 = vmatpush1.msra.mxu0 %v54
    %893 = vmatprep.subr.mxu0 %v59
    %894 = vmatpush1.msra.mxu0 %v58
    %895 = vmatprep.subr.mxu0 %v63
    %896 = vmatpush1.msra.mxu0 %v62
    %897 = vmatprep.subr.mxu0 %v67
    %898 = vmatpush1.msra.mxu0 %v66
    %899 = vmatprep.subr.mxu0 %v71
    %900 = vmatpush1.msra.mxu0 %v70
    %901 = vmatprep.subr.mxu0 %v75
    %902 = vmatpush1.msra.mxu0 %v74
    %903 = vmatprep.subr.mxu0 %v79
    %904 = vmatpush1.msra.mxu0 %v78
    %905 = vmatprep.subr.mxu0 %v83
    %906 = vmatpush1.msra.mxu0 %v82
    %907 = vmatprep.subr.mxu0 %v87
    %908 = vmatpush1.msra.mxu0 %v86
    %909 = vmatprep.subr.mxu0 %v91
    %910 = vmatpush1.msra.mxu0 %v90
    %911 = vmatprep.subr.mxu0 %v95
    %912 = vmatpush1.msra.mxu0 %v94
    %913 = vmatprep.subr.mxu0 %v99
    %914 = vmatpush1.msra.mxu0 %v98
    %915 = vmatprep.subr.mxu0 %v103
    %916 = vmatpush1.msra.mxu0 %v102
    %917 = vmatprep.subr.mxu0 %v107
    %918 = vmatpush1.msra.mxu0 %v106
    %919 = vmatprep.subr.mxu0 %v111
    %920 = vmatpush1.msra.mxu0 %v110
    %921 = vmatprep.subr.mxu0 0.0
    %922 = vmatpush1.msra.mxu0 0.0
    %923 = vmatprep.subr.mxu0 0.0
    %924 = vmatpush1.msra.mxu0 0.0
    %925 = vmatprep.subr.mxu0 0.0
    %926 = vmatpush1.msra.mxu0 0.0
    %927 = vmatprep.subr.mxu0 0.0
    %928 = vmatpush1.msra.mxu0 0.0
    %929 = vmatprep.subr.mxu0 0.0
    %930 = vmatpush1.msra.mxu0 0.0
    %931 = vmatprep.subr.mxu0 0.0
    %932 = vmatpush1.msra.mxu0 0.0
    %933 = vmatprep.subr.mxu0 0.0
    %934 = vmatpush1.msra.mxu0 0.0
    %935 = vmatprep.subr.mxu0 0.0
    %936 = vmatpush1.msra.mxu0 0.0
    %937 = vmatprep.subr.mxu0 0.0
    %938 = vmatpush1.msra.mxu0 0.0
    %939 = vmatprep.subr.mxu0 0.0
    %940 = vmatpush1.msra.mxu0 0.0
    %941 = vmatprep.subr.mxu0 0.0
    %942 = vmatpush1.msra.mxu0 0.0
    %943 = vmatprep.subr.mxu0 0.0
    %944 = vmatpush1.msra.mxu0 0.0
    %945 = vmatprep.subr.mxu0 0.0
    %946 = vmatpush1.msra.mxu0 0.0
    %947 = vmatprep.subr.mxu0 0.0
    %948 = vmatpush1.msra.mxu0 0.0
    %949 = vmatprep.subr.mxu0 0.0
    %950 = vmatpush1.msra.mxu0 0.0
    %951 = vmatprep.subr.mxu0 0.0
    %952 = vmatpush1.msra.mxu0 0.0
    %953 = vmatprep.mubr.f32.mxu0 0.0
    %954 = vmatmul.mubr.f32.gmra.mrb[0].mxu0 %v812
    %v955 = vpop.f32.mrb[0].mxu0
    %v956 = vadd.f32 0.0, %v955
    %v957 = vpop.f32.mrb[0].mxu0
    %v958 = vadd.f32 0.0, %v957
    %959 = vdwg.mxu0
    %v960 = vadd.f32 %v814, %v885
    %v961 = vadd.f32 %v815, %v887
    %v962 = vadd.f32 %v816, %v956
    %v963 = vadd.f32 %v817, %v958
    %v964 = vxor.u32 %v960, 2147483648
    %v965 = vmul.f32 %v964, 1.442695
    %v966 = vpow.pop %v965
    %v967 = vadd.f32 %v966, 1.0
    %v968 = vrcp.pop %v967
    %v969 = vmul.f32 1.0, %v968
    %v970 = vxor.u32 %v961, 2147483648
    %v971 = vmul.f32 %v970, 1.442695
    %v972 = vpow.pop %v971
    %v973 = vadd.f32 %v972, 1.0
    %v974 = vrcp.pop %v973
    %v975 = vmul.f32 1.0, %v974
    %v976 = vtanh.pop %v962
    %v977 = vxor.u32 %v963, 2147483648
    %v978 = vmul.f32 %v977, 1.442695
    %v979 = vpow.pop %v978
    %v980 = vadd.f32 %v979, 1.0
    %v981 = vrcp.pop %v980
    %v982 = vmul.f32 1.0, %v981
    %v983 = vmul.f32 %v975, %v810
    %v984 = vmul.f32 %v969, %v976
    %v985 = vadd.f32 %v983, %v984
    %v986 = vtanh.pop %v985
    %v987 = vmul.f32 %v982, %v986
    %s988 = scalar_lea.vmem [#allocation5], 160
    %v989 = vld [vmem:[%s988] sm:$0xff]
    %v990 = vld [vmem:[%s988 + $0x8] sm:$0xff]
    %v991 = vld [vmem:[%s988 + $0x10] sm:$0xff]
    %v992 = vld [vmem:[%s988 + $0x18] sm:$0xff]
    %993 = vmatprep.subr.mxu0 %v49
    %994 = vmatpush1.msra.mxu0 %v48
    %995 = vmatprep.subr.mxu0 %v53
    %996 = vmatpush1.msra.mxu0 %v52
    %997 = vmatprep.subr.mxu0 %v57
    %998 = vmatpush1.msra.mxu0 %v56
    %999 = vmatprep.subr.mxu0 %v61
    %1000 = vmatpush1.msra.mxu0 %v60
    %1001 = vmatprep.subr.mxu0 %v65
    %1002 = vmatpush1.msra.mxu0 %v64
    %1003 = vmatprep.subr.mxu0 %v69
    %1004 = vmatpush1.msra.mxu0 %v68
    %1005 = vmatprep.subr.mxu0 %v73
    %1006 = vmatpush1.msra.mxu0 %v72
    %1007 = vmatprep.subr.mxu0 %v77
    %1008 = vmatpush1.msra.mxu0 %v76
    %1009 = vmatprep.subr.mxu0 %v81
    %1010 = vmatpush1.msra.mxu0 %v80
    %1011 = vmatprep.subr.mxu0 %v85
    %1012 = vmatpush1.msra.mxu0 %v84
    %1013 = vmatprep.subr.mxu0 %v89
    %1014 = vmatpush1.msra.mxu0 %v88
    %1015 = vmatprep.subr.mxu0 %v93
    %1016 = vmatpush1.msra.mxu0 %v92
    %1017 = vmatprep.subr.mxu0 %v97
    %1018 = vmatpush1.msra.mxu0 %v96
    %1019 = vmatprep.subr.mxu0 %v101
    %1020 = vmatpush1.msra.mxu0 %v100
    %1021 = vmatprep.subr.mxu0 %v105
    %1022 = vmatpush1.msra.mxu0 %v104
    %1023 = vmatprep.subr.mxu0 %v109
    %1024 = vmatpush1.msra.mxu0 %v108
    %1025 = vmatprep.subr.mxu0 0.0
    %1026 = vmatpush1.msra.mxu0 0.0
    %1027 = vmatprep.subr.mxu0 0.0
    %1028 = vmatpush1.msra.mxu0 0.0
    %1029 = vmatprep.subr.mxu0 0.0
    %1030 = vmatpush1.msra.mxu0 0.0
    %1031 = vmatprep.subr.mxu0 0.0
    %1032 = vmatpush1.msra.mxu0 0.0
    %1033 = vmatprep.subr.mxu0 0.0
    %1034 = vmatpush1.msra.mxu0 0.0
    %1035 = vmatprep.subr.mxu0 0.0
    %1036 = vmatpush1.msra.mxu0 0.0
    %1037 = vmatprep.subr.mxu0 0.0
    %1038 = vmatpush1.msra.mxu0 0.0
    %1039 = vmatprep.subr.mxu0 0.0
    %1040 = vmatpush1.msra.mxu0 0.0
    %1041 = vmatprep.subr.mxu0 0.0
    %1042 = vmatpush1.msra.mxu0 0.0
    %1043 = vmatprep.subr.mxu0 0.0
    %1044 = vmatpush1.msra.mxu0 0.0
    %1045 = vmatprep.subr.mxu0 0.0
    %1046 = vmatpush1.msra.mxu0 0.0
    %1047 = vmatprep.subr.mxu0 0.0
    %1048 = vmatpush1.msra.mxu0 0.0
    %1049 = vmatprep.subr.mxu0 0.0
    %1050 = vmatpush1.msra.mxu0 0.0
    %1051 = vmatprep.subr.mxu0 0.0
    %1052 = vmatpush1.msra.mxu0 0.0
    %1053 = vmatprep.subr.mxu0 0.0
    %1054 = vmatpush1.msra.mxu0 0.0
    %1055 = vmatprep.subr.mxu0 0.0
    %1056 = vmatpush1.msra.mxu0 0.0
    %1057 = vmatprep.mubr.f32.mxu0 0.0
    %1058 = vmatmul.mubr.f32.gmra.mrb[0].mxu0 %v987
    %v1059 = vpop.f32.mrb[0].mxu0
    %v1060 = vadd.f32 0.0, %v1059
    %v1061 = vpop.f32.mrb[0].mxu0
    %v1062 = vadd.f32 0.0, %v1061
    %1063 = vdwg.mxu0
    %1064 = vmatprep.subr.mxu0 %v51
    %1065 = vmatpush1.msra.mxu0 %v50
    %1066 = vmatprep.subr.mxu0 %v55
    %1067 = vmatpush1.msra.mxu0 %v54
    %1068 = vmatprep.subr.mxu0 %v59
    %1069 = vmatpush1.msra.mxu0 %v58
    %1070 = vmatprep.subr.mxu0 %v63
    %1071 = vmatpush1.msra.mxu0 %v62
    %1072 = vmatprep.subr.mxu0 %v67
    %1073 = vmatpush1.msra.mxu0 %v66
    %1074 = vmatprep.subr.mxu0 %v71
    %1075 = vmatpush1.msra.mxu0 %v70
    %1076 = vmatprep.subr.mxu0 %v75
    %1077 = vmatpush1.msra.mxu0 %v74
    %1078 = vmatprep.subr.mxu0 %v79
    %1079 = vmatpush1.msra.mxu0 %v78
    %1080 = vmatprep.subr.mxu0 %v83
    %1081 = vmatpush1.msra.mxu0 %v82
    %1082 = vmatprep.subr.mxu0 %v87
    %1083 = vmatpush1.msra.mxu0 %v86
    %1084 = vmatprep.subr.mxu0 %v91
    %1085 = vmatpush1.msra.mxu0 %v90
    %1086 = vmatprep.subr.mxu0 %v95
    %1087 = vmatpush1.msra.mxu0 %v94
    %1088 = vmatprep.subr.mxu0 %v99
    %1089 = vmatpush1.msra.mxu0 %v98
    %1090 = vmatprep.subr.mxu0 %v103
    %1091 = vmatpush1.msra.mxu0 %v102
    %1092 = vmatprep.subr.mxu0 %v107
    %1093 = vmatpush1.msra.mxu0 %v106
    %1094 = vmatprep.subr.mxu0 %v111
    %1095 = vmatpush1.msra.mxu0 %v110
    %1096 = vmatprep.subr.mxu0 0.0
    %1097 = vmatpush1.msra.mxu0 0.0
    %1098 = vmatprep.subr.mxu0 0.0
    %1099 = vmatpush1.msra.mxu0 0.0
    %1100 = vmatprep.subr.mxu0 0.0
    %1101 = vmatpush1.msra.mxu0 0.0
    %1102 = vmatprep.subr.mxu0 0.0
    %1103 = vmatpush1.msra.mxu0 0.0
    %1104 = vmatprep.subr.mxu0 0.0
    %1105 = vmatpush1.msra.mxu0 0.0
    %1106 = vmatprep.subr.mxu0 0.0
    %1107 = vmatpush1.msra.mxu0 0.0
    %1108 = vmatprep.subr.mxu0 0.0
    %1109 = vmatpush1.msra.mxu0 0.0
    %1110 = vmatprep.subr.mxu0 0.0
    %1111 = vmatpush1.msra.mxu0 0.0
    %1112 = vmatprep.subr.mxu0 0.0
    %1113 = vmatpush1.msra.mxu0 0.0
    %1114 = vmatprep.subr.mxu0 0.0
    %1115 = vmatpush1.msra.mxu0 0.0
    %1116 = vmatprep.subr.mxu0 0.0
    %1117 = vmatpush1.msra.mxu0 0.0
    %1118 = vmatprep.subr.mxu0 0.0
    %1119 = vmatpush1.msra.mxu0 0.0
    %1120 = vmatprep.subr.mxu0 0.0
    %1121 = vmatpush1.msra.mxu0 0.0
    %1122 = vmatprep.subr.mxu0 0.0
    %1123 = vmatpush1.msra.mxu0 0.0
    %1124 = vmatprep.subr.mxu0 0.0
    %1125 = vmatpush1.msra.mxu0 0.0
    %1126 = vmatprep.subr.mxu0 0.0
    %1127 = vmatpush1.msra.mxu0 0.0
    %1128 = vmatprep.mubr.f32.mxu0 0.0
    %1129 = vmatmul.mubr.f32.gmra.mrb[0].mxu0 %v987
    %v1130 = vpop.f32.mrb[0].mxu0
    %v1131 = vadd.f32 0.0, %v1130
    %v1132 = vpop.f32.mrb[0].mxu0
    %v1133 = vadd.f32 0.0, %v1132
    %1134 = vdwg.mxu0
    %v1135 = vadd.f32 %v989, %v1060
    %v1136 = vadd.f32 %v990, %v1062
    %v1137 = vadd.f32 %v991, %v1131
    %v1138 = vadd.f32 %v992, %v1133
    %v1139 = vxor.u32 %v1135, 2147483648
    %v1140 = vmul.f32 %v1139, 1.442695
    %v1141 = vpow.pop %v1140
    %v1142 = vadd.f32 %v1141, 1.0
    %v1143 = vrcp.pop %v1142
    %v1144 = vmul.f32 1.0, %v1143
    %v1145 = vxor.u32 %v1136, 2147483648
    %v1146 = vmul.f32 %v1145, 1.442695
    %v1147 = vpow.pop %v1146
    %v1148 = vadd.f32 %v1147, 1.0
    %v1149 = vrcp.pop %v1148
    %v1150 = vmul.f32 1.0, %v1149
    %v1151 = vtanh.pop %v1137
    %v1152 = vxor.u32 %v1138, 2147483648
    %v1153 = vmul.f32 %v1152, 1.442695
    %v1154 = vpow.pop %v1153
    %v1155 = vadd.f32 %v1154, 1.0
    %v1156 = vrcp.pop %v1155
    %v1157 = vmul.f32 1.0, %v1156
    %v1158 = vmul.f32 %v1150, %v985
    %v1159 = vmul.f32 %v1144, %v1151
    %v1160 = vadd.f32 %v1158, %v1159
    %v1161 = vtanh.pop %v1160
    %v1162 = vmul.f32 %v1157, %v1161
    %s1163 = scalar_lea.vmem [#allocation5], 192
    %v1164 = vld [vmem:[%s1163] sm:$0xff]
    %v1165 = vld [vmem:[%s1163 + $0x8] sm:$0xff]
    %v1166 = vld [vmem:[%s1163 + $0x10] sm:$0xff]
    %v1167 = vld [vmem:[%s1163 + $0x18] sm:$0xff]
    %1168 = vmatprep.subr.mxu0 %v49
    %1169 = vmatpush1.msra.mxu0 %v48
    %1170 = vmatprep.subr.mxu0 %v53
    %1171 = vmatpush1.msra.mxu0 %v52
    %1172 = vmatprep.subr.mxu0 %v57
    %1173 = vmatpush1.msra.mxu0 %v56
    %1174 = vmatprep.subr.mxu0 %v61
    %1175 = vmatpush1.msra.mxu0 %v60
    %1176 = vmatprep.subr.mxu0 %v65
    %1177 = vmatpush1.msra.mxu0 %v64
    %1178 = vmatprep.subr.mxu0 %v69
    %1179 = vmatpush1.msra.mxu0 %v68
    %1180 = vmatprep.subr.mxu0 %v73
    %1181 = vmatpush1.msra.mxu0 %v72
    %1182 = vmatprep.subr.mxu0 %v77
    %1183 = vmatpush1.msra.mxu0 %v76
    %1184 = vmatprep.subr.mxu0 %v81
    %1185 = vmatpush1.msra.mxu0 %v80
    %1186 = vmatprep.subr.mxu0 %v85
    %1187 = vmatpush1.msra.mxu0 %v84
    %1188 = vmatprep.subr.mxu0 %v89
    %1189 = vmatpush1.msra.mxu0 %v88
    %1190 = vmatprep.subr.mxu0 %v93
    %1191 = vmatpush1.msra.mxu0 %v92
    %1192 = vmatprep.subr.mxu0 %v97
    %1193 = vmatpush1.msra.mxu0 %v96
    %1194 = vmatprep.subr.mxu0 %v101
    %1195 = vmatpush1.msra.mxu0 %v100
    %1196 = vmatprep.subr.mxu0 %v105
    %1197 = vmatpush1.msra.mxu0 %v104
    %1198 = vmatprep.subr.mxu0 %v109
    %1199 = vmatpush1.msra.mxu0 %v108
    %1200 = vmatprep.subr.mxu0 0.0
    %1201 = vmatpush1.msra.mxu0 0.0
    %1202 = vmatprep.subr.mxu0 0.0
    %1203 = vmatpush1.msra.mxu0 0.0
    %1204 = vmatprep.subr.mxu0 0.0
    %1205 = vmatpush1.msra.mxu0 0.0
    %1206 = vmatprep.subr.mxu0 0.0
    %1207 = vmatpush1.msra.mxu0 0.0
    %1208 = vmatprep.subr.mxu0 0.0
    %1209 = vmatpush1.msra.mxu0 0.0
    %1210 = vmatprep.subr.mxu0 0.0
    %1211 = vmatpush1.msra.mxu0 0.0
    %1212 = vmatprep.subr.mxu0 0.0
    %1213 = vmatpush1.msra.mxu0 0.0
    %1214 = vmatprep.subr.mxu0 0.0
    %1215 = vmatpush1.msra.mxu0 0.0
    %1216 = vmatprep.subr.mxu0 0.0
    %1217 = vmatpush1.msra.mxu0 0.0
    %1218 = vmatprep.subr.mxu0 0.0
    %1219 = vmatpush1.msra.mxu0 0.0
    %1220 = vmatprep.subr.mxu0 0.0
    %1221 = vmatpush1.msra.mxu0 0.0
    %1222 = vmatprep.subr.mxu0 0.0
    %1223 = vmatpush1.msra.mxu0 0.0
    %1224 = vmatprep.subr.mxu0 0.0
    %1225 = vmatpush1.msra.mxu0 0.0
    %1226 = vmatprep.subr.mxu0 0.0
    %1227 = vmatpush1.msra.mxu0 0.0
    %1228 = vmatprep.subr.mxu0 0.0
    %1229 = vmatpush1.msra.mxu0 0.0
    %1230 = vmatprep.subr.mxu0 0.0
    %1231 = vmatpush1.msra.mxu0 0.0
    %1232 = vmatprep.mubr.f32.mxu0 0.0
    %1233 = vmatmul.mubr.f32.gmra.mrb[0].mxu0 %v1162
    %v1234 = vpop.f32.mrb[0].mxu0
    %v1235 = vadd.f32 0.0, %v1234
    %v1236 = vpop.f32.mrb[0].mxu0
    %v1237 = vadd.f32 0.0, %v1236
    %1238 = vdwg.mxu0
    %1239 = vmatprep.subr.mxu0 %v51
    %1240 = vmatpush1.msra.mxu0 %v50
    %1241 = vmatprep.subr.mxu0 %v55
    %1242 = vmatpush1.msra.mxu0 %v54
    %1243 = vmatprep.subr.mxu0 %v59
    %1244 = vmatpush1.msra.mxu0 %v58
    %1245 = vmatprep.subr.mxu0 %v63
    %1246 = vmatpush1.msra.mxu0 %v62
    %1247 = vmatprep.subr.mxu0 %v67
    %1248 = vmatpush1.msra.mxu0 %v66
    %1249 = vmatprep.subr.mxu0 %v71
    %1250 = vmatpush1.msra.mxu0 %v70
    %1251 = vmatprep.subr.mxu0 %v75
    %1252 = vmatpush1.msra.mxu0 %v74
    %1253 = vmatprep.subr.mxu0 %v79
    %1254 = vmatpush1.msra.mxu0 %v78
    %1255 = vmatprep.subr.mxu0 %v83
    %1256 = vmatpush1.msra.mxu0 %v82
    %1257 = vmatprep.subr.mxu0 %v87
    %1258 = vmatpush1.msra.mxu0 %v86
    %1259 = vmatprep.subr.mxu0 %v91
    %1260 = vmatpush1.msra.mxu0 %v90
    %1261 = vmatprep.subr.mxu0 %v95
    %1262 = vmatpush1.msra.mxu0 %v94
    %1263 = vmatprep.subr.mxu0 %v99
    %1264 = vmatpush1.msra.mxu0 %v98
    %1265 = vmatprep.subr.mxu0 %v103
    %1266 = vmatpush1.msra.mxu0 %v102
    %1267 = vmatprep.subr.mxu0 %v107
    %1268 = vmatpush1.msra.mxu0 %v106
    %1269 = vmatprep.subr.mxu0 %v111
    %1270 = vmatpush1.msra.mxu0 %v110
    %1271 = vmatprep.subr.mxu0 0.0
    %1272 = vmatpush1.msra.mxu0 0.0
    %1273 = vmatprep.subr.mxu0 0.0
    %1274 = vmatpush1.msra.mxu0 0.0
    %1275 = vmatprep.subr.mxu0 0.0
    %1276 = vmatpush1.msra.mxu0 0.0
    %1277 = vmatprep.subr.mxu0 0.0
    %1278 = vmatpush1.msra.mxu0 0.0
    %1279 = vmatprep.subr.mxu0 0.0
    %1280 = vmatpush1.msra.mxu0 0.0
    %1281 = vmatprep.subr.mxu0 0.0
    %1282 = vmatpush1.msra.mxu0 0.0
    %1283 = vmatprep.subr.mxu0 0.0
    %1284 = vmatpush1.msra.mxu0 0.0
    %1285 = vmatprep.subr.mxu0 0.0
    %1286 = vmatpush1.msra.mxu0 0.0
    %1287 = vmatprep.subr.mxu0 0.0
    %1288 = vmatpush1.msra.mxu0 0.0
    %1289 = vmatprep.subr.mxu0 0.0
    %1290 = vmatpush1.msra.mxu0 0.0
    %1291 = vmatprep.subr.mxu0 0.0
    %1292 = vmatpush1.msra.mxu0 0.0
    %1293 = vmatprep.subr.mxu0 0.0
    %1294 = vmatpush1.msra.mxu0 0.0
    %1295 = vmatprep.subr.mxu0 0.0
    %1296 = vmatpush1.msra.mxu0 0.0
    %1297 = vmatprep.subr.mxu0 0.0
    %1298 = vmatpush1.msra.mxu0 0.0
    %1299 = vmatprep.subr.mxu0 0.0
    %1300 = vmatpush1.msra.mxu0 0.0
    %1301 = vmatprep.subr.mxu0 0.0
    %1302 = vmatpush1.msra.mxu0 0.0
    %1303 = vmatprep.mubr.f32.mxu0 0.0
    %1304 = vmatmul.mubr.f32.gmra.mrb[0].mxu0 %v1162
    %v1305 = vpop.f32.mrb[0].mxu0
    %v1306 = vadd.f32 0.0, %v1305
    %v1307 = vpop.f32.mrb[0].mxu0
    %v1308 = vadd.f32 0.0, %v1307
    %1309 = vdwg.mxu0
    %v1310 = vadd.f32 %v1164, %v1235
    %v1311 = vadd.f32 %v1165, %v1237
    %v1312 = vadd.f32 %v1166, %v1306
    %v1313 = vadd.f32 %v1167, %v1308
    %v1314 = vxor.u32 %v1310, 2147483648
    %v1315 = vmul.f32 %v1314, 1.442695
    %v1316 = vpow.pop %v1315
    %v1317 = vadd.f32 %v1316, 1.0
    %v1318 = vrcp.pop %v1317
    %v1319 = vmul.f32 1.0, %v1318
    %v1320 = vxor.u32 %v1311, 2147483648
    %v1321 = vmul.f32 %v1320, 1.442695
    %v1322 = vpow.pop %v1321
    %v1323 = vadd.f32 %v1322, 1.0
    %v1324 = vrcp.pop %v1323
    %v1325 = vmul.f32 1.0, %v1324
    %v1326 = vtanh.pop %v1312
    %v1327 = vxor.u32 %v1313, 2147483648
    %v1328 = vmul.f32 %v1327, 1.442695
    %v1329 = vpow.pop %v1328
    %v1330 = vadd.f32 %v1329, 1.0
    %v1331 = vrcp.pop %v1330
    %v1332 = vmul.f32 1.0, %v1331
    %v1333 = vmul.f32 %v1325, %v1160
    %v1334 = vmul.f32 %v1319, %v1326
    %v1335 = vadd.f32 %v1333, %v1334
    %v1336 = vtanh.pop %v1335
    %v1337 = vmul.f32 %v1332, %v1336
    %s1338 = scalar_lea.vmem [#allocation5], 224
    %v1339 = vld [vmem:[%s1338] sm:$0xff]
    %v1340 = vld [vmem:[%s1338 + $0x8] sm:$0xff]
    %v1341 = vld [vmem:[%s1338 + $0x10] sm:$0xff]
    %v1342 = vld [vmem:[%s1338 + $0x18] sm:$0xff]
    %1343 = vmatprep.subr.mxu0 %v49
    %1344 = vmatpush1.msra.mxu0 %v48
    %1345 = vmatprep.subr.mxu0 %v53
    %1346 = vmatpush1.msra.mxu0 %v52
    %1347 = vmatprep.subr.mxu0 %v57
    %1348 = vmatpush1.msra.mxu0 %v56
    %1349 = vmatprep.subr.mxu0 %v61
    %1350 = vmatpush1.msra.mxu0 %v60
    %1351 = vmatprep.subr.mxu0 %v65
    %1352 = vmatpush1.msra.mxu0 %v64
    %1353 = vmatprep.subr.mxu0 %v69
    %1354 = vmatpush1.msra.mxu0 %v68
    %1355 = vmatprep.subr.mxu0 %v73
    %1356 = vmatpush1.msra.mxu0 %v72
    %1357 = vmatprep.subr.mxu0 %v77
    %1358 = vmatpush1.msra.mxu0 %v76
    %1359 = vmatprep.subr.mxu0 %v81
    %1360 = vmatpush1.msra.mxu0 %v80
    %1361 = vmatprep.subr.mxu0 %v85
    %1362 = vmatpush1.msra.mxu0 %v84
    %1363 = vmatprep.subr.mxu0 %v89
    %1364 = vmatpush1.msra.mxu0 %v88
    %1365 = vmatprep.subr.mxu0 %v93
    %1366 = vmatpush1.msra.mxu0 %v92
    %1367 = vmatprep.subr.mxu0 %v97
    %1368 = vmatpush1.msra.mxu0 %v96
    %1369 = vmatprep.subr.mxu0 %v101
    %1370 = vmatpush1.msra.mxu0 %v100
    %1371 = vmatprep.subr.mxu0 %v105
    %1372 = vmatpush1.msra.mxu0 %v104
    %1373 = vmatprep.subr.mxu0 %v109
    %1374 = vmatpush1.msra.mxu0 %v108
    %1375 = vmatprep.subr.mxu0 0.0
    %1376 = vmatpush1.msra.mxu0 0.0
    %1377 = vmatprep.subr.mxu0 0.0
    %1378 = vmatpush1.msra.mxu0 0.0
    %1379 = vmatprep.subr.mxu0 0.0
    %1380 = vmatpush1.msra.mxu0 0.0
    %1381 = vmatprep.subr.mxu0 0.0
    %1382 = vmatpush1.msra.mxu0 0.0
    %1383 = vmatprep.subr.mxu0 0.0
    %1384 = vmatpush1.msra.mxu0 0.0
    %1385 = vmatprep.subr.mxu0 0.0
    %1386 = vmatpush1.msra.mxu0 0.0
    %1387 = vmatprep.subr.mxu0 0.0
    %1388 = vmatpush1.msra.mxu0 0.0
    %1389 = vmatprep.subr.mxu0 0.0
    %1390 = vmatpush1.msra.mxu0 0.0
    %1391 = vmatprep.subr.mxu0 0.0
    %1392 = vmatpush1.msra.mxu0 0.0
    %1393 = vmatprep.subr.mxu0 0.0
    %1394 = vmatpush1.msra.mxu0 0.0
    %1395 = vmatprep.subr.mxu0 0.0
    %1396 = vmatpush1.msra.mxu0 0.0
    %1397 = vmatprep.subr.mxu0 0.0
    %1398 = vmatpush1.msra.mxu0 0.0
    %1399 = vmatprep.subr.mxu0 0.0
    %1400 = vmatpush1.msra.mxu0 0.0
    %1401 = vmatprep.subr.mxu0 0.0
    %1402 = vmatpush1.msra.mxu0 0.0
    %1403 = vmatprep.subr.mxu0 0.0
    %1404 = vmatpush1.msra.mxu0 0.0
    %1405 = vmatprep.subr.mxu0 0.0
    %1406 = vmatpush1.msra.mxu0 0.0
    %1407 = vmatprep.mubr.f32.mxu0 0.0
    %1408 = vmatmul.mubr.f32.gmra.mrb[0].mxu0 %v1337
    %v1409 = vpop.f32.mrb[0].mxu0
    %v1410 = vadd.f32 0.0, %v1409
    %v1411 = vpop.f32.mrb[0].mxu0
    %v1412 = vadd.f32 0.0, %v1411
    %1413 = vdwg.mxu0
    %1414 = vmatprep.subr.mxu0 %v51
    %1415 = vmatpush1.msra.mxu0 %v50
    %1416 = vmatprep.subr.mxu0 %v55
    %1417 = vmatpush1.msra.mxu0 %v54
    %1418 = vmatprep.subr.mxu0 %v59
    %1419 = vmatpush1.msra.mxu0 %v58
    %1420 = vmatprep.subr.mxu0 %v63
    %1421 = vmatpush1.msra.mxu0 %v62
    %1422 = vmatprep.subr.mxu0 %v67
    %1423 = vmatpush1.msra.mxu0 %v66
    %1424 = vmatprep.subr.mxu0 %v71
    %1425 = vmatpush1.msra.mxu0 %v70
    %1426 = vmatprep.subr.mxu0 %v75
    %1427 = vmatpush1.msra.mxu0 %v74
    %1428 = vmatprep.subr.mxu0 %v79
    %1429 = vmatpush1.msra.mxu0 %v78
    %1430 = vmatprep.subr.mxu0 %v83
    %1431 = vmatpush1.msra.mxu0 %v82
    %1432 = vmatprep.subr.mxu0 %v87
    %1433 = vmatpush1.msra.mxu0 %v86
    %1434 = vmatprep.subr.mxu0 %v91
    %1435 = vmatpush1.msra.mxu0 %v90
    %1436 = vmatprep.subr.mxu0 %v95
    %1437 = vmatpush1.msra.mxu0 %v94
    %1438 = vmatprep.subr.mxu0 %v99
    %1439 = vmatpush1.msra.mxu0 %v98
    %1440 = vmatprep.subr.mxu0 %v103
    %1441 = vmatpush1.msra.mxu0 %v102
    %1442 = vmatprep.subr.mxu0 %v107
    %1443 = vmatpush1.msra.mxu0 %v106
    %1444 = vmatprep.subr.mxu0 %v111
    %1445 = vmatpush1.msra.mxu0 %v110
    %1446 = vmatprep.subr.mxu0 0.0
    %1447 = vmatpush1.msra.mxu0 0.0
    %1448 = vmatprep.subr.mxu0 0.0
    %1449 = vmatpush1.msra.mxu0 0.0
    %1450 = vmatprep.subr.mxu0 0.0
    %1451 = vmatpush1.msra.mxu0 0.0
    %1452 = vmatprep.subr.mxu0 0.0
    %1453 = vmatpush1.msra.mxu0 0.0
    %1454 = vmatprep.subr.mxu0 0.0
    %1455 = vmatpush1.msra.mxu0 0.0
    %1456 = vmatprep.subr.mxu0 0.0
    %1457 = vmatpush1.msra.mxu0 0.0
    %1458 = vmatprep.subr.mxu0 0.0
    %1459 = vmatpush1.msra.mxu0 0.0
    %1460 = vmatprep.subr.mxu0 0.0
    %1461 = vmatpush1.msra.mxu0 0.0
    %1462 = vmatprep.subr.mxu0 0.0
    %1463 = vmatpush1.msra.mxu0 0.0
    %1464 = vmatprep.subr.mxu0 0.0
    %1465 = vmatpush1.msra.mxu0 0.0
    %1466 = vmatprep.subr.mxu0 0.0
    %1467 = vmatpush1.msra.mxu0 0.0
    %1468 = vmatprep.subr.mxu0 0.0
    %1469 = vmatpush1.msra.mxu0 0.0
    %1470 = vmatprep.subr.mxu0 0.0
    %1471 = vmatpush1.msra.mxu0 0.0
    %1472 = vmatprep.subr.mxu0 0.0
    %1473 = vmatpush1.msra.mxu0 0.0
    %1474 = vmatprep.subr.mxu0 0.0
    %1475 = vmatpush1.msra.mxu0 0.0
    %1476 = vmatprep.subr.mxu0 0.0
    %1477 = vmatpush1.msra.mxu0 0.0
    %1478 = vmatprep.mubr.f32.mxu0 0.0
    %1479 = vmatmul.mubr.f32.gmra.mrb[0].mxu0 %v1337
    %v1480 = vpop.f32.mrb[0].mxu0
    %v1481 = vadd.f32 0.0, %v1480
    %v1482 = vpop.f32.mrb[0].mxu0
    %v1483 = vadd.f32 0.0, %v1482
    %1484 = vdwg.mxu0
    %v1485 = vadd.f32 %v1339, %v1410
    %v1486 = vadd.f32 %v1340, %v1412
    %v1487 = vadd.f32 %v1341, %v1481
    %v1488 = vadd.f32 %v1342, %v1483
    %v1489 = vxor.u32 %v1485, 2147483648
    %v1490 = vmul.f32 %v1489, 1.442695
    %v1491 = vpow.pop %v1490
    %v1492 = vadd.f32 %v1491, 1.0
    %v1493 = vrcp.pop %v1492
    %v1494 = vmul.f32 1.0, %v1493
    %v1495 = vxor.u32 %v1486, 2147483648
    %v1496 = vmul.f32 %v1495, 1.442695
    %v1497 = vpow.pop %v1496
    %v1498 = vadd.f32 %v1497, 1.0
    %v1499 = vrcp.pop %v1498
    %v1500 = vmul.f32 1.0, %v1499
    %v1501 = vtanh.pop %v1487
    %v1502 = vxor.u32 %v1488, 2147483648
    %v1503 = vmul.f32 %v1502, 1.442695
    %v1504 = vpow.pop %v1503
    %v1505 = vadd.f32 %v1504, 1.0
    %v1506 = vrcp.pop %v1505
    %v1507 = vmul.f32 1.0, %v1506
    %v1508 = vmul.f32 %v1500, %v1335
    %v1509 = vmul.f32 %v1494, %v1501
    %v1510 = vadd.f32 %v1508, %v1509
    %v1511 = vtanh.pop %v1510
    %v1512 = vmul.f32 %v1507, %v1511
    %1513 = vst [vmem:[#allocation3] sm:$0xff] %v1512
    %1514 = vst [vmem:[#allocation4] sm:$0xff] %v1510
    // Predicated region
    $region19: #{tpu_custom_call.1} parent=1 // pred_check
      %p1515 = pneg %p27
    $region20: #{tpu_custom_call.1} parent=1 // pred_check_branch
      %1517 = sbr.rel (%p1515) target = $region22
    $region21: #{tpu_custom_call.1} parent=1 // pred_region
      %1518 = vst [vmem:[#allocation8] sm:$0xff] %v1512
      %1519 = vst [vmem:[#allocation9] sm:$0xff] %v1510
    $region22: #{tpu_custom_call.1} parent=1 // pred_fallthru
      _
    // Predicated region
    $region23: #{tpu_custom_call.1} parent=1 // pred_check
      _
    $region24: #{tpu_custom_call.1} parent=1 // pred_check_branch
      %1521 = sbr.rel (0) target = $region26
    $region25: #{tpu_custom_call.1} parent=1 // pred_region
      %s1523 = ssub.s32 128, 128
      %1524 = vsyncadd [#allocation7], %s1523
      %s1526 = sshll.u32 [#allocation8], 4
      %s1527 = int_to_ptr.vmem [resolvable:$true] %s1526
      %1529 = dma.vmem_to_hbm [thread:$0]  %s1527, 128, %s2, [#allocation7]
    $region26: #{tpu_custom_call.1} parent=1 // pred_fallthru
      _
    // Predicated region
    $region27: #{tpu_custom_call.1} parent=1 // pred_check
      _
    $region28: #{tpu_custom_call.1} parent=1 // pred_check_branch
      %1531 = sbr.rel (0) target = $region30
    $region29: #{tpu_custom_call.1} parent=1 // pred_region
      %s1533 = ssub.s32 128, 128
      %1534 = vsyncadd [#allocation10], %s1533
      %s1536 = sshll.u32 [#allocation9], 4
      %s1537 = int_to_ptr.vmem [resolvable:$true] %s1536
      %1539 = dma.vmem_to_hbm [thread:$0]  %s1537, 128, %s3, [#allocation10]
    $region30: #{tpu_custom_call.1} parent=1 // pred_fallthru
      _
    // Predicated region
    $region31: #{tpu_custom_call.1} parent=1 // pred_check
      _
    $region32: #{tpu_custom_call.1} parent=1 // pred_check_branch
      %1541 = sbr.rel (0) target = $region34
    $region33: #{tpu_custom_call.1} parent=1 // pred_region
      %1542 = dma.done [#allocation7], 128
    $region34: #{tpu_custom_call.1} parent=1 // pred_fallthru
      _
    // Predicated region
    $region35: #{tpu_custom_call.1} parent=1 // pred_check
      _
    $region36: #{tpu_custom_call.1} parent=1 // pred_check_branch
      %1544 = sbr.rel (0) target = $region38
    $region37: #{tpu_custom_call.1} parent=1 // pred_region
      %1545 = dma.done [#allocation10], 128
    $region38: #{tpu_custom_call.1} parent=1 // pred_fallthru
      _
    %1546 = vsyncpa [#allocation6], 1
    %1547 = vsyncpa [#allocation7], 1
    %1548 = vsyncpa [#allocation10], 1

</llo_original>
